<compile_context>
chip_gen: v7x
topology: tpu7x:2x2x1
jax: 0.10.0
libtpu: 0.0.40
codegen_flags: <defaults>
</compile_context>

<pallas_src>
import functools

import jax
import jax.numpy as jnp
from jax import lax
from jax.experimental import pallas as pl
from jax.experimental.pallas import tpu as pltpu

EPS = 1e-5


def _round_up(v, m):
    return (v + m - 1) // m * m


def _ublock_kernel(x_ref, u_ref, s1_ref, t1_ref, s2_ref, t2_ref, w_ref, b_ref,
                   o_ref, pad_ref, col_ref, *, H, W, sf, lead, tile_cols):
    # x_ref : (1, Cin, H*W)      low-res input image, spatial flat on lanes
    # u_ref : (H*W, Hu*Wu) bf16  batch-invariant nearest-upsample one-hot (resident)
    # s*/t* : (Cin, 1)           fused BN scale/shift (train-mode stats)
    # w_ref : (Cout, 9*2*Cin)    both convs' taps packed bf16: tap-major, [conv1|conv0]
    # b_ref : (Cout, 1)          b1 + b0
    # o_ref : (1, Cout, tile)    NCHW output column tile (lane-dense stores)
    Cin = x_ref.shape[1]
    HW = H * W
    Hu, Wu = H * sf, W * sf
    HuWu = Hu * Wu
    C2 = 2 * Cin
    t = pl.program_id(1)

    # ---------- per-image phase (first column tile of each image only) ----------
    @pl.when(t == 0)
    def _build_image():
        # fused BN1/ReLU/BN2/ReLU at LOW resolution (per-channel affine + relu and
        # BN2's batch stats commute with nearest integer upsample).
        x = x_ref[0]                                            # (Cin, H*W) f32
        g = jnp.maximum(x * s1_ref[...] + t1_ref[...], 0.0)
        g = jnp.maximum(g * s2_ref[...] + t2_ref[...], 0.0)
        both_low = jnp.concatenate([g, x], axis=0)              # (2Cin, H*W): [conv1|conv0]

        # nearest sf-x upsample as a bf16 one-hot matmul on the MXU.  The one-hot is
        # built once in the wrapper; 0/1 weights make the result exactly
        # bf16(both_low) replicated, so no extra rounding is introduced here.
        both_up = jnp.dot(both_low.astype(jnp.bfloat16), u_ref[...],
                          preferred_element_type=jnp.float32)   # (2Cin, Hu*Wu) f32

        # flat zero-padded scratch: border zeros implement the conv zero padding and
        # row under/overflow.  Borders are 2 x (2Cin, lead) f32 (~4 vregs), so
        # re-zeroing per image is essentially free and megacore-safe (no cross-core
        # scratch persistence assumption).
        pad_ref[:, 0:lead] = jnp.zeros((C2, lead), jnp.float32)
        pad_ref[:, lead + HuWu:lead + HuWu + lead] = jnp.zeros((C2, lead), jnp.float32)
        pad_ref[:, lead:lead + HuWu] = both_up

        # im2col: 9 shifted lane-slices -> (9*2Cin, Hu*Wu) slab, reused by all tiles.
        jmod = lax.broadcasted_iota(jnp.int32, (1, HuWu), 1) % Wu
        for dy in range(3):
            for dx in range(3):
                k = dy * 3 + dx
                start = lead + (dy - 1) * Wu + (dx - 1)          # static int, >= 0
                slab = pad_ref[:, start:start + HuWu]            # (2Cin, Hu*Wu)
                if dx == 0:      # left tap wraps into previous row -> zero column 0
                    slab = jnp.where(jmod != 0, slab, 0.0)
                elif dx == 2:    # right tap wraps into next row -> zero last column
                    slab = jnp.where(jmod != Wu - 1, slab, 0.0)
                col_ref[k * C2:(k + 1) * C2, :] = slab           # f32-tile aligned store

    # ---------- per-tile phase: both 3x3 convs + both biases, one bf16 MXU pass ----------
    c0 = pl.multiple_of(t * tile_cols, 128)
    cols = col_ref[:, pl.ds(c0, tile_cols)].astype(jnp.bfloat16)   # (18Cin, tile)
    acc = jnp.dot(w_ref[...], cols, preferred_element_type=jnp.float32)
    o_ref[...] = (acc + b_ref[...])[None].astype(o_ref.dtype)


def ublock_forward(x_nchw, params, scale_factor=2, col_tiles=2):
    """PyTorch-semantics UBlock forward. x_nchw: (N, Cin, H, W) f32 -> (N, Cout, H*sf, W*sf)."""
    gamma1, beta1, gamma2, beta2, w0, b0, w1, b1 = params

    sf = int(scale_factor)
    # Both the BN2-stats shortcut and the one-hot upsample assume integer-factor
    # 'nearest' upsampling (the module's fixed mode).
    assert sf == scale_factor and sf >= 1, "scale_factor must be a positive integer"

    x_nchw = x_nchw.astype(jnp.float32)
    N, Cin, H, W = x_nchw.shape
    Cout = w0.shape[0]
    Hu, Wu = H * sf, W * sf
    HW, HuWu = H * W, Hu * Wu
    assert HuWu % 128 == 0, "flattened up-res spatial dim must be lane aligned"

    lead = max(128, _round_up(Wu + 1, 128))    # lane-aligned pad; taps never under/overflow
    npad = lead + HuWu + lead

    # one-hot upsample matrix is O((H*W)^2 * sf^2) bytes; keep it resident only while
    # small.  TODO(synk): for large H*W tile the upsample over row bands or switch to
    # the per-phase subpixel decomposition.
    assert HW * HuWu * 2 <= 8 * 1024 * 1024, "one-hot upsample matrix too large for VMEM"

    # lane-dense output-column tiling: >=2 tiles per image gives pipeline depth on
    # v7x megacore and double-buffered writeback everywhere.
    T = max(1, int(col_tiles))
    while T > 1 and HuWu % (T * 128) != 0:
        T -= 1
    tile_cols = HuWu // T

    x = x_nchw.reshape(N, Cin, HW)             # NCHW, spatial flattened on lanes (free)

    # training-mode BatchNorm statistics (biased variance, centered sums — avoids the
    # E[x^2]-E[x]^2 cancellation).  Nearest integer upsample replicates each pixel
    # sf*sf times, so BN2's batch stats over up(relu(bn1(x))) equal those over
    # relu(bn1(x)).
    # TODO(synk): at production N/H/W fold these reductions into a Pallas pre-pass so
    # relu(bn1(x)) is never materialized / re-streamed from HBM.
    m1 = jnp.mean(x, axis=(0, 2))
    v1 = jnp.mean(jnp.square(x - m1[None, :, None]), axis=(0, 2))
    s1 = gamma1 / jnp.sqrt(v1 + EPS)
    t1 = beta1 - m1 * s1
    a = jnp.maximum(x * s1[None, :, None] + t1[None, :, None], 0.0)
    m2 = jnp.mean(a, axis=(0, 2))
    v2 = jnp.mean(jnp.square(a - m2[None, :, None]), axis=(0, 2))
    s2 = gamma2 / jnp.sqrt(v2 + EPS)
    t2 = beta2 - m2 * s2

    # batch-invariant nearest-upsample one-hot, built ONCE (0/1 is exact in bf16).
    q = jnp.arange(HuWu, dtype=jnp.int32)
    src = (q // Wu // sf) * W + (q % Wu) // sf
    u = (jnp.arange(HW, dtype=jnp.int32)[:, None] == src[None, :]).astype(jnp.bfloat16)

    # pack both convs into one (Cout, 9*2*Cin) bf16 slab; column order is tap
    # (dy,dx)-major, then [conv1 channels | conv0 channels], matching the im2col row
    # order built in the kernel.  Biases are pre-summed.
    w1_t = jnp.transpose(w1, (2, 3, 0, 1))                  # (3,3,Cout,Cin)
    w0_t = jnp.transpose(w0, (2, 3, 0, 1))
    w_packed = jnp.concatenate([w1_t, w0_t], axis=3)        # (3,3,Cout,2Cin)
    w_packed = jnp.transpose(w_packed, (2, 0, 1, 3)).reshape(Cout, 9 * 2 * Cin)
    w_packed = w_packed.astype(jnp.bfloat16)
    bias = (b0 + b1)[:, None].astype(jnp.float32)           # (Cout, 1)

    kernel = functools.partial(_ublock_kernel, H=H, W=W, sf=sf, lead=lead,
                               tile_cols=tile_cols)

    out = pl.pallas_call(
        kernel,
        out_shape=jax.ShapeDtypeStruct((N, Cout, HuWu), jnp.float32),
        grid_spec=pltpu.PrefetchScalarGridSpec(
            num_scalar_prefetch=0,
            grid=(N, T),                                     # image-major, column tiles minor
            in_specs=[
                pl.BlockSpec((1, Cin, HW), lambda n, t: (n, 0, 0)),
                pl.BlockSpec((HW, HuWu), lambda n, t: (0, 0)),   # resident one-hot, DMA'd once
                pl.BlockSpec((Cin, 1), lambda n, t: (0, 0)),
                pl.BlockSpec((Cin, 1), lambda n, t: (0, 0)),
                pl.BlockSpec((Cin, 1), lambda n, t: (0, 0)),
                pl.BlockSpec((Cin, 1), lambda n, t: (0, 0)),
                pl.BlockSpec((Cout, 9 * 2 * Cin), lambda n, t: (0, 0)),
                pl.BlockSpec((Cout, 1), lambda n, t: (0, 0)),
            ],
            out_specs=pl.BlockSpec((1, Cout, tile_cols), lambda n, t: (n, 0, t)),
            scratch_shapes=[
                pltpu.VMEM((2 * Cin, npad), jnp.float32),          # zero-padded flat image pair
                pltpu.VMEM((9 * 2 * Cin, HuWu), jnp.float32),      # im2col slab (persists over tiles)
            ],
        ),
        compiler_params=pltpu.CompilerParams(
            dimension_semantics=("parallel", "arbitrary")),
    )(x, u, s1[:, None], t1[:, None], s2[:, None], t2[:, None], w_packed, bias)

    return out.reshape(N, Cout, Hu, Wu)        # (N, Cout, Hu*Wu) is already NCHW


def ublock_ref(x, params, scale_factor=2):
    """Pure-JAX f32 reference mirroring the PyTorch module (NCHW, train-mode BN)."""
    gamma1, beta1, gamma2, beta2, w0, b0, w1, b1 = params

    def bn(z, gamma, beta):
        m = jnp.mean(z, axis=(0, 2, 3), keepdims=True)
        v = jnp.mean((z - m) ** 2, axis=(0, 2, 3), keepdims=True)
        return ((z - m) / jnp.sqrt(v + EPS)) * gamma[None, :, None, None] \
            + beta[None, :, None, None]

    def up(z):
        return jnp.repeat(jnp.repeat(z, scale_factor, axis=2), scale_factor, axis=3)

    def conv(z, w, b):
        y = lax.conv_general_dilated(
            z, w, window_strides=(1, 1), padding=((1, 1), (1, 1)),
            dimension_numbers=('NCHW', 'OIHW', 'NCHW'),
            precision=lax.Precision.HIGHEST)
        return y + b[None, :, None, None]

    out = bn(x, gamma1, beta1)
    out = jnp.maximum(out, 0.0)
    out = up(out)
    out = bn(out, gamma2, beta2)
    out = jnp.maximum(out, 0.0)
    out = conv(out, w1, b1)
    return out + conv(up(x), w0, b0)


if __name__ == "__main__":
    key = jax.random.PRNGKey(0)
    N, Cin, H, W = 2, 4, 16, 16
    Cout = 8

    ks = jax.random.split(key, 9)
    x = jax.random.normal(ks[0], (N, Cin, H, W), jnp.float32)

    # deterministic synthetic parameters (shapes from nn.Module __init__)
    gamma1 = 1.0 + 0.1 * jax.random.normal(ks[1], (Cin,), jnp.float32)
    beta1 = 0.1 * jax.random.normal(ks[2], (Cin,), jnp.float32)
    gamma2 = 1.0 + 0.1 * jax.random.normal(ks[3], (Cin,), jnp.float32)
    beta2 = 0.1 * jax.random.normal(ks[4], (Cin,), jnp.float32)
    fan = float(Cin * 3 * 3)
    w0 = jax.random.normal(ks[5], (Cout, Cin, 3, 3), jnp.float32) / jnp.sqrt(fan)
    b0 = 0.1 * jax.random.normal(ks[6], (Cout,), jnp.float32)
    w1 = jax.random.normal(ks[7], (Cout, Cin, 3, 3), jnp.float32) / jnp.sqrt(fan)
    b1 = 0.1 * jax.random.normal(ks[8], (Cout,), jnp.float32)
    params = (gamma1, beta1, gamma2, beta2, w0, b0, w1, b1)

    out = ublock_forward(x, params)
    out = jax.block_until_ready(out)

    ref = ublock_ref(x, params)
    assert out.shape == (N, Cout, 2 * H, 2 * W), out.shape
    # bf16 MXU operands (per perf review) -> slightly looser tolerance than pure f32.
    if not bool(jnp.allclose(out, ref, atol=2e-2, rtol=2e-2)):
        raise SystemExit(
            f"MISMATCH: max abs err = {float(jnp.max(jnp.abs(out - ref)))}")

    print("KERNEL_OK")
</pallas_src>

<mosaic_0001>
module attributes {stable_mosaic.version = 11 : i64} {
  func.func @_ublock_kernel(%arg0: i32, %arg1: i32, %arg2: memref<1x4x256xf32, #tpu.memory_space<vmem>>, %arg3: memref<256x1024xbf16, #tpu.memory_space<vmem>>, %arg4: memref<4x1xf32, #tpu.memory_space<vmem>>, %arg5: memref<4x1xf32, #tpu.memory_space<vmem>>, %arg6: memref<4x1xf32, #tpu.memory_space<vmem>>, %arg7: memref<4x1xf32, #tpu.memory_space<vmem>>, %arg8: memref<8x72xbf16, #tpu.memory_space<vmem>>, %arg9: memref<8x1xf32, #tpu.memory_space<vmem>>, %arg10: memref<1x8x512xf32, #tpu.memory_space<vmem>>, %arg11: memref<8x1280xf32, #tpu.memory_space<vmem>>, %arg12: memref<72x1024xf32, #tpu.memory_space<vmem>>) attributes {dimension_semantics = [#tpu.dimension_semantics<parallel>, #tpu.dimension_semantics<arbitrary>], iteration_bounds = array<i64: 2, 2>, scalar_prefetch = 0 : i64, scratch_operands = 2 : i64, tpu.core_type = #tpu.core_type<tc>, window_params = [{transform_indices = @transform_0, window_bounds = array<i64: 1, 4, 256>}, {pipeline_mode = #tpu.pipeline_mode<synchronous>, transform_indices = @transform_1, window_bounds = array<i64: 256, 1024>}, {pipeline_mode = #tpu.pipeline_mode<synchronous>, transform_indices = @transform_2, window_bounds = array<i64: 4, 1>}, {pipeline_mode = #tpu.pipeline_mode<synchronous>, transform_indices = @transform_3, window_bounds = array<i64: 4, 1>}, {pipeline_mode = #tpu.pipeline_mode<synchronous>, transform_indices = @transform_4, window_bounds = array<i64: 4, 1>}, {pipeline_mode = #tpu.pipeline_mode<synchronous>, transform_indices = @transform_5, window_bounds = array<i64: 4, 1>}, {pipeline_mode = #tpu.pipeline_mode<synchronous>, transform_indices = @transform_6, window_bounds = array<i64: 8, 72>}, {pipeline_mode = #tpu.pipeline_mode<synchronous>, transform_indices = @transform_7, window_bounds = array<i64: 8, 1>}, {transform_indices = @transform_8, window_bounds = array<i64: 1, 8, 512>}]} {
    %c0_i32 = arith.constant 0 : i32
    %0 = arith.cmpi eq, %arg1, %c0_i32 : i32
    %1 = arith.extui %0 : i1 to i32
    %c0_i32_0 = arith.constant 0 : i32
    %2 = arith.cmpi ne, %1, %c0_i32_0 : i32
    scf.if %2 {
      %c0_8 = arith.constant 0 : index
      %c0_9 = arith.constant 0 : index
      %c0_10 = arith.constant 0 : index
      %15 = vector.load %arg2[%c0_8, %c0_9, %c0_10] : memref<1x4x256xf32, #tpu.memory_space<vmem>>, vector<1x4x256xf32>
      %16 = vector.shape_cast %15 : vector<1x4x256xf32> to vector<4x256xf32>
      %c0_11 = arith.constant 0 : index
      %c0_12 = arith.constant 0 : index
      %17 = vector.load %arg4[%c0_11, %c0_12] : memref<4x1xf32, #tpu.memory_space<vmem>>, vector<4x1xf32>
      %18 = vector.broadcast %17 : vector<4x1xf32> to vector<4x256xf32>
      %19 = arith.mulf %16, %18 : vector<4x256xf32>
      %c0_13 = arith.constant 0 : index
      %c0_14 = arith.constant 0 : index
      %20 = vector.load %arg5[%c0_13, %c0_14] : memref<4x1xf32, #tpu.memory_space<vmem>>, vector<4x1xf32>
      %21 = vector.broadcast %20 : vector<4x1xf32> to vector<4x256xf32>
      %22 = arith.addf %19, %21 : vector<4x256xf32>
      %cst_15 = arith.constant 0.000000e+00 : f32
      %23 = vector.broadcast %cst_15 : f32 to vector<4x256xf32>
      %24 = arith.maximumf %22, %23 : vector<4x256xf32>
      %c0_16 = arith.constant 0 : index
      %c0_17 = arith.constant 0 : index
      %25 = vector.load %arg6[%c0_16, %c0_17] : memref<4x1xf32, #tpu.memory_space<vmem>>, vector<4x1xf32>
      %26 = vector.broadcast %25 : vector<4x1xf32> to vector<4x256xf32>
      %27 = arith.mulf %24, %26 : vector<4x256xf32>
      %c0_18 = arith.constant 0 : index
      %c0_19 = arith.constant 0 : index
      %28 = vector.load %arg7[%c0_18, %c0_19] : memref<4x1xf32, #tpu.memory_space<vmem>>, vector<4x1xf32>
      %29 = vector.broadcast %28 : vector<4x1xf32> to vector<4x256xf32>
      %30 = arith.addf %27, %29 : vector<4x256xf32>
      %cst_20 = arith.constant 0.000000e+00 : f32
      %31 = vector.broadcast %cst_20 : f32 to vector<4x256xf32>
      %32 = arith.maximumf %30, %31 : vector<4x256xf32>
      %33 = tpu.concatenate %32, %16 in 0 : vector<4x256xf32>, vector<4x256xf32> -> vector<8x256xf32>
      %34 = arith.truncf %33 : vector<8x256xf32> to vector<8x256xbf16>
      %c0_21 = arith.constant 0 : index
      %c0_22 = arith.constant 0 : index
      %35 = vector.load %arg3[%c0_21, %c0_22] : memref<256x1024xbf16, #tpu.memory_space<vmem>>, vector<256x1024xbf16>
      %cst_23 = arith.constant dense<0.000000e+00> : vector<8x1024xf32>
      %36 = tpu.matmul %34, %35, %cst_23 {dimension_numbers = #tpu.dot_dimension_numbers<[1], [0], [0], [1], [0, 0, 1, 1], [], []>} : vector<8x256xbf16>, vector<256x1024xbf16>, vector<8x1024xf32> -> vector<8x1024xf32>
      %cst_24 = arith.constant 0.000000e+00 : f32
      %37 = vector.broadcast %cst_24 : f32 to vector<8x128xf32>
      %c0_25 = arith.constant 0 : index
      %c0_26 = arith.constant 0 : index
      %38 = vector.load %arg11[%c0_25, %c0_26] : memref<8x1280xf32, #tpu.memory_space<vmem>>, vector<8x128xf32>
      tpu.vector_store %arg11[%c0_25, %c0_26], %37 {strides = array<i32>} : memref<8x1280xf32, #tpu.memory_space<vmem>>, vector<8x128xf32>,
      %cst_27 = arith.constant 0.000000e+00 : f32
      %39 = vector.broadcast %cst_27 : f32 to vector<8x128xf32>
      %c0_28 = arith.constant 0 : index
      %c1152 = arith.constant 1152 : index
      %40 = vector.load %arg11[%c0_28, %c1152] : memref<8x1280xf32, #tpu.memory_space<vmem>>, vector<8x128xf32>
      tpu.vector_store %arg11[%c0_28, %c1152], %39 {strides = array<i32>} : memref<8x1280xf32, #tpu.memory_space<vmem>>, vector<8x128xf32>,
      %c0_29 = arith.constant 0 : index
      %c128 = arith.constant 128 : index
      %41 = vector.load %arg11[%c0_29, %c128] : memref<8x1280xf32, #tpu.memory_space<vmem>>, vector<8x1024xf32>
      tpu.vector_store %arg11[%c0_29, %c128], %36 {strides = array<i32>} : memref<8x1280xf32, #tpu.memory_space<vmem>>, vector<8x1024xf32>,
      %42 = tpu.iota {dimensions = array<i32: 1>} : vector<1x1024xi32>
      %c32_i32 = arith.constant 32 : i32
      %c0_i32_30 = arith.constant 0 : i32
      %43 = arith.cmpi eq, %c32_i32, %c0_i32_30 : i32
      %c1_i32 = arith.constant 1 : i32
      %44 = arith.select %43, %c1_i32, %c32_i32 : i32
      %45 = vector.broadcast %44 : i32 to vector<1x1024xi32>
      %46 = arith.remsi %42, %45 : vector<1x1024xi32>
      %c0_i32_31 = arith.constant 0 : i32
      %47 = vector.broadcast %c0_i32_31 : i32 to vector<1x1024xi32>
      %48 = arith.cmpi ne, %46, %47 : vector<1x1024xi32>
      %c0_i32_32 = arith.constant 0 : i32
      %49 = vector.broadcast %c0_i32_32 : i32 to vector<1x1024xi32>
      %50 = arith.cmpi slt, %46, %49 : vector<1x1024xi32>
      %c0_i32_33 = arith.constant 0 : i32
      %51 = arith.cmpi slt, %44, %c0_i32_33 : i32
      %52 = vector.broadcast %51 : i1 to vector<1x1024xi1>
      %53 = vector.broadcast %52 : vector<1x1024xi1> to vector<1x1024xi1>
      %54 = arith.xori %50, %53 : vector<1x1024xi1>
      %55 = arith.andi %54, %48 : vector<1x1024xi1>
      %56 = vector.broadcast %44 : i32 to vector<1x1024xi32>
      %57 = arith.addi %46, %56 : vector<1x1024xi32>
      %58 = arith.select %55, %57, %46 : vector<1x1024xi1>, vector<1x1024xi32>
      %c0_34 = arith.constant 0 : index
      %c95 = arith.constant 95 : index
      %59 = vector.load %arg11[%c0_34, %c95] : memref<8x1280xf32, #tpu.memory_space<vmem>>, vector<8x1024xf32>
      %c0_i32_35 = arith.constant 0 : i32
      %60 = vector.broadcast %c0_i32_35 : i32 to vector<1x1024xi32>
      %61 = arith.cmpi ne, %58, %60 : vector<1x1024xi32>
      %cst_36 = arith.constant 0.000000e+00 : f32
      %62 = vector.shape_cast %61 : vector<1x1024xi1> to vector<1x1024xi1>
      %63 = vector.broadcast %62 : vector<1x1024xi1> to vector<8x1024xi1>
      %64 = vector.broadcast %cst_36 : f32 to vector<8x1024xf32>
      %65 = arith.select %63, %59, %64 : vector<8x1024xi1>, vector<8x1024xf32>
      %c0_37 = arith.constant 0 : index
      %c0_38 = arith.constant 0 : index
      %66 = vector.load %arg12[%c0_37, %c0_38] : memref<72x1024xf32, #tpu.memory_space<vmem>>, vector<8x1024xf32>
      tpu.vector_store %arg12[%c0_37, %c0_38], %65 {strides = array<i32>} : memref<72x1024xf32, #tpu.memory_space<vmem>>, vector<8x1024xf32>,
      %c0_39 = arith.constant 0 : index
      %c96 = arith.constant 96 : index
      %67 = vector.load %arg11[%c0_39, %c96] : memref<8x1280xf32, #tpu.memory_space<vmem>>, vector<8x1024xf32>
      %c8 = arith.constant 8 : index
      %c0_40 = arith.constant 0 : index
      %68 = vector.load %arg12[%c8, %c0_40] : memref<72x1024xf32, #tpu.memory_space<vmem>>, vector<8x1024xf32>
      tpu.vector_store %arg12[%c8, %c0_40], %67 {strides = array<i32>} : memref<72x1024xf32, #tpu.memory_space<vmem>>, vector<8x1024xf32>,
      %c0_41 = arith.constant 0 : index
      %c97 = arith.constant 97 : index
      %69 = vector.load %arg11[%c0_41, %c97] : memref<8x1280xf32, #tpu.memory_space<vmem>>, vector<8x1024xf32>
      %c31_i32 = arith.constant 31 : i32
      %70 = vector.broadcast %c31_i32 : i32 to vector<1x1024xi32>
      %71 = arith.cmpi ne, %58, %70 : vector<1x1024xi32>
      %cst_42 = arith.constant 0.000000e+00 : f32
      %72 = vector.shape_cast %71 : vector<1x1024xi1> to vector<1x1024xi1>
      %73 = vector.broadcast %72 : vector<1x1024xi1> to vector<8x1024xi1>
      %74 = vector.broadcast %cst_42 : f32 to vector<8x1024xf32>
      %75 = arith.select %73, %69, %74 : vector<8x1024xi1>, vector<8x1024xf32>
      %c16 = arith.constant 16 : index
      %c0_43 = arith.constant 0 : index
      %76 = vector.load %arg12[%c16, %c0_43] : memref<72x1024xf32, #tpu.memory_space<vmem>>, vector<8x1024xf32>
      tpu.vector_store %arg12[%c16, %c0_43], %75 {strides = array<i32>} : memref<72x1024xf32, #tpu.memory_space<vmem>>, vector<8x1024xf32>,
      %c0_44 = arith.constant 0 : index
      %c127 = arith.constant 127 : index
      %77 = vector.load %arg11[%c0_44, %c127] : memref<8x1280xf32, #tpu.memory_space<vmem>>, vector<8x1024xf32>
      %c0_i32_45 = arith.constant 0 : i32
      %78 = vector.broadcast %c0_i32_45 : i32 to vector<1x1024xi32>
      %79 = arith.cmpi ne, %58, %78 : vector<1x1024xi32>
      %cst_46 = arith.constant 0.000000e+00 : f32
      %80 = vector.shape_cast %79 : vector<1x1024xi1> to vector<1x1024xi1>
      %81 = vector.broadcast %80 : vector<1x1024xi1> to vector<8x1024xi1>
      %82 = vector.broadcast %cst_46 : f32 to vector<8x1024xf32>
      %83 = arith.select %81, %77, %82 : vector<8x1024xi1>, vector<8x1024xf32>
      %c24 = arith.constant 24 : index
      %c0_47 = arith.constant 0 : index
      %84 = vector.load %arg12[%c24, %c0_47] : memref<72x1024xf32, #tpu.memory_space<vmem>>, vector<8x1024xf32>
      tpu.vector_store %arg12[%c24, %c0_47], %83 {strides = array<i32>} : memref<72x1024xf32, #tpu.memory_space<vmem>>, vector<8x1024xf32>,
      %c0_48 = arith.constant 0 : index
      %c128_49 = arith.constant 128 : index
      %85 = vector.load %arg11[%c0_48, %c128_49] : memref<8x1280xf32, #tpu.memory_space<vmem>>, vector<8x1024xf32>
      %c32 = arith.constant 32 : index
      %c0_50 = arith.constant 0 : index
      %86 = vector.load %arg12[%c32, %c0_50] : memref<72x1024xf32, #tpu.memory_space<vmem>>, vector<8x1024xf32>
      tpu.vector_store %arg12[%c32, %c0_50], %85 {strides = array<i32>} : memref<72x1024xf32, #tpu.memory_space<vmem>>, vector<8x1024xf32>,
      %c0_51 = arith.constant 0 : index
      %c129 = arith.constant 129 : index
      %87 = vector.load %arg11[%c0_51, %c129] : memref<8x1280xf32, #tpu.memory_space<vmem>>, vector<8x1024xf32>
      %c31_i32_52 = arith.constant 31 : i32
      %88 = vector.broadcast %c31_i32_52 : i32 to vector<1x1024xi32>
      %89 = arith.cmpi ne, %58, %88 : vector<1x1024xi32>
      %cst_53 = arith.constant 0.000000e+00 : f32
      %90 = vector.shape_cast %89 : vector<1x1024xi1> to vector<1x1024xi1>
      %91 = vector.broadcast %90 : vector<1x1024xi1> to vector<8x1024xi1>
      %92 = vector.broadcast %cst_53 : f32 to vector<8x1024xf32>
      %93 = arith.select %91, %87, %92 : vector<8x1024xi1>, vector<8x1024xf32>
      %c40 = arith.constant 40 : index
      %c0_54 = arith.constant 0 : index
      %94 = vector.load %arg12[%c40, %c0_54] : memref<72x1024xf32, #tpu.memory_space<vmem>>, vector<8x1024xf32>
      tpu.vector_store %arg12[%c40, %c0_54], %93 {strides = array<i32>} : memref<72x1024xf32, #tpu.memory_space<vmem>>, vector<8x1024xf32>,
      %c0_55 = arith.constant 0 : index
      %c159 = arith.constant 159 : index
      %95 = vector.load %arg11[%c0_55, %c159] : memref<8x1280xf32, #tpu.memory_space<vmem>>, vector<8x1024xf32>
      %c0_i32_56 = arith.constant 0 : i32
      %96 = vector.broadcast %c0_i32_56 : i32 to vector<1x1024xi32>
      %97 = arith.cmpi ne, %58, %96 : vector<1x1024xi32>
      %cst_57 = arith.constant 0.000000e+00 : f32
      %98 = vector.shape_cast %97 : vector<1x1024xi1> to vector<1x1024xi1>
      %99 = vector.broadcast %98 : vector<1x1024xi1> to vector<8x1024xi1>
      %100 = vector.broadcast %cst_57 : f32 to vector<8x1024xf32>
      %101 = arith.select %99, %95, %100 : vector<8x1024xi1>, vector<8x1024xf32>
      %c48 = arith.constant 48 : index
      %c0_58 = arith.constant 0 : index
      %102 = vector.load %arg12[%c48, %c0_58] : memref<72x1024xf32, #tpu.memory_space<vmem>>, vector<8x1024xf32>
      tpu.vector_store %arg12[%c48, %c0_58], %101 {strides = array<i32>} : memref<72x1024xf32, #tpu.memory_space<vmem>>, vector<8x1024xf32>,
      %c0_59 = arith.constant 0 : index
      %c160 = arith.constant 160 : index
      %103 = vector.load %arg11[%c0_59, %c160] : memref<8x1280xf32, #tpu.memory_space<vmem>>, vector<8x1024xf32>
      %c56 = arith.constant 56 : index
      %c0_60 = arith.constant 0 : index
      %104 = vector.load %arg12[%c56, %c0_60] : memref<72x1024xf32, #tpu.memory_space<vmem>>, vector<8x1024xf32>
      tpu.vector_store %arg12[%c56, %c0_60], %103 {strides = array<i32>} : memref<72x1024xf32, #tpu.memory_space<vmem>>, vector<8x1024xf32>,
      %c0_61 = arith.constant 0 : index
      %c161 = arith.constant 161 : index
      %105 = vector.load %arg11[%c0_61, %c161] : memref<8x1280xf32, #tpu.memory_space<vmem>>, vector<8x1024xf32>
      %c31_i32_62 = arith.constant 31 : i32
      %106 = vector.broadcast %c31_i32_62 : i32 to vector<1x1024xi32>
      %107 = arith.cmpi ne, %58, %106 : vector<1x1024xi32>
      %cst_63 = arith.constant 0.000000e+00 : f32
      %108 = vector.shape_cast %107 : vector<1x1024xi1> to vector<1x1024xi1>
      %109 = vector.broadcast %108 : vector<1x1024xi1> to vector<8x1024xi1>
      %110 = vector.broadcast %cst_63 : f32 to vector<8x1024xf32>
      %111 = arith.select %109, %105, %110 : vector<8x1024xi1>, vector<8x1024xf32>
      %c64 = arith.constant 64 : index
      %c0_64 = arith.constant 0 : index
      %112 = vector.load %arg12[%c64, %c0_64] : memref<72x1024xf32, #tpu.memory_space<vmem>>, vector<8x1024xf32>
      tpu.vector_store %arg12[%c64, %c0_64], %111 {strides = array<i32>} : memref<72x1024xf32, #tpu.memory_space<vmem>>, vector<8x1024xf32>,
    } else {
    }
    %c512_i32 = arith.constant 512 : i32
    %3 = arith.muli %arg1, %c512_i32 : i32
    %4 = tpu.assume_multiple %3, 128 : i32
    %c0 = arith.constant 0 : index
    %5 = arith.index_cast %4 : i32 to index
    %6 = vector.load %arg12[%c0, %5] : memref<72x1024xf32, #tpu.memory_space<vmem>>, vector<72x512xf32>
    %7 = arith.truncf %6 : vector<72x512xf32> to vector<72x512xbf16>
    %c0_1 = arith.constant 0 : index
    %c0_2 = arith.constant 0 : index
    %8 = vector.load %arg8[%c0_1, %c0_2] : memref<8x72xbf16, #tpu.memory_space<vmem>>, vector<8x72xbf16>
    %cst = arith.constant dense<0.000000e+00> : vector<8x512xf32>
    %9 = tpu.matmul %8, %7, %cst {dimension_numbers = #tpu.dot_dimension_numbers<[1], [0], [0], [1], [0, 0, 1, 1], [], []>} : vector<8x72xbf16>, vector<72x512xbf16>, vector<8x512xf32> -> vector<8x512xf32>
    %c0_3 = arith.constant 0 : index
    %c0_4 = arith.constant 0 : index
    %10 = vector.load %arg9[%c0_3, %c0_4] : memref<8x1xf32, #tpu.memory_space<vmem>>, vector<8x1xf32>
    %11 = vector.broadcast %10 : vector<8x1xf32> to vector<8x512xf32>
    %12 = arith.addf %9, %11 : vector<8x512xf32>
    %13 = vector.shape_cast %12 : vector<8x512xf32> to vector<1x8x512xf32>
    %c0_5 = arith.constant 0 : index
    %c0_6 = arith.constant 0 : index
    %c0_7 = arith.constant 0 : index
    %14 = vector.load %arg10[%c0_5, %c0_6, %c0_7] : memref<1x8x512xf32, #tpu.memory_space<vmem>>, vector<1x8x512xf32>
    tpu.vector_store %arg10[%c0_5, %c0_6, %c0_7], %13 {strides = array<i32>} : memref<1x8x512xf32, #tpu.memory_space<vmem>>, vector<1x8x512xf32>,
    return
  }
  func.func @transform_0(%arg0: i32, %arg1: i32) -> (i32, i32, i32) {
    %c0_i32 = arith.constant 0 : i32
    %c0_i32_0 = arith.constant 0 : i32
    %c0_i32_1 = arith.constant 0 : i32
    return %arg0, %c0_i32, %c0_i32_0 : i32, i32, i32
  }
  func.func @transform_1(%arg0: i32, %arg1: i32) -> (i32, i32) {
    %c0_i32 = arith.constant 0 : i32
    %c0_i32_0 = arith.constant 0 : i32
    %c0_i32_1 = arith.constant 0 : i32
    return %c0_i32, %c0_i32_0 : i32, i32
  }
  func.func @transform_2(%arg0: i32, %arg1: i32) -> (i32, i32) {
    %c0_i32 = arith.constant 0 : i32
    %c0_i32_0 = arith.constant 0 : i32
    %c0_i32_1 = arith.constant 0 : i32
    return %c0_i32, %c0_i32_0 : i32, i32
  }
  func.func @transform_3(%arg0: i32, %arg1: i32) -> (i32, i32) {
    %c0_i32 = arith.constant 0 : i32
    %c0_i32_0 = arith.constant 0 : i32
    %c0_i32_1 = arith.constant 0 : i32
    return %c0_i32, %c0_i32_0 : i32, i32
  }
  func.func @transform_4(%arg0: i32, %arg1: i32) -> (i32, i32) {
    %c0_i32 = arith.constant 0 : i32
    %c0_i32_0 = arith.constant 0 : i32
    %c0_i32_1 = arith.constant 0 : i32
    return %c0_i32, %c0_i32_0 : i32, i32
  }
  func.func @transform_5(%arg0: i32, %arg1: i32) -> (i32, i32) {
    %c0_i32 = arith.constant 0 : i32
    %c0_i32_0 = arith.constant 0 : i32
    %c0_i32_1 = arith.constant 0 : i32
    return %c0_i32, %c0_i32_0 : i32, i32
  }
  func.func @transform_6(%arg0: i32, %arg1: i32) -> (i32, i32) {
    %c0_i32 = arith.constant 0 : i32
    %c0_i32_0 = arith.constant 0 : i32
    %c0_i32_1 = arith.constant 0 : i32
    return %c0_i32, %c0_i32_0 : i32, i32
  }
  func.func @transform_7(%arg0: i32, %arg1: i32) -> (i32, i32) {
    %c0_i32 = arith.constant 0 : i32
    %c0_i32_0 = arith.constant 0 : i32
    %c0_i32_1 = arith.constant 0 : i32
    return %c0_i32, %c0_i32_0 : i32, i32
  }
  func.func @transform_8(%arg0: i32, %arg1: i32) -> (i32, i32, i32) {
    %c0_i32 = arith.constant 0 : i32
    %c0_i32_0 = arith.constant 0 : i32
    return %arg0, %c0_i32, %arg1 : i32, i32, i32
  }
}

</mosaic_0001>

<llo_original>
// kernel: tpu_custom_call.1
$region0: #{tpu_custom_call.1}
  #allocation0 [shape = 'u32[]', space=smem, size = 0x4, offset = 0x4, fixed_abs, tag = 'smem constant byte address 0x4 - core index']
  #allocation1 [shape = 'u32[144,128]{1,0:T(1,128)}', space=vmem, size = 0x12000, scoped, tag = 'internal scratch']
  #allocation2 [shape = 'f32[8,1280]{1,0:T(8,128)}', space=vmem, size = 0xa000, scoped, tag = 'scratch operand']
  #allocation3 [shape = 'f32[72,1024]{1,0:T(8,128)}', space=vmem, size = 0x48000, scoped, tag = 'scratch operand']
  %s0 = inlined_call_operand.vmem [shape: f32[2,4,256], index: 0, kind: input, shape index: {}]
  %s1 = inlined_call_operand.hbm [shape: bf16[256,1024], index: 1, kind: input, shape index: {}]
  %s2 = inlined_call_operand.vmem [shape: f32[4,1], index: 2, kind: input, shape index: {}]
  %s3 = inlined_call_operand.vmem [shape: f32[4,1], index: 3, kind: input, shape index: {}]
  %s4 = inlined_call_operand.vmem [shape: f32[4,1], index: 4, kind: input, shape index: {}]
  %s5 = inlined_call_operand.vmem [shape: f32[4,1], index: 5, kind: input, shape index: {}]
  %s6 = inlined_call_operand.vmem [shape: bf16[8,72], index: 6, kind: input, shape index: {}]
  %s7 = inlined_call_operand.vmem [shape: f32[8,1], index: 7, kind: input, shape index: {}]
  %s8 = inlined_call_operand.hbm [shape: f32[2,8,1024], index: 8, kind: output, shape index: {}]
  %s9 = sld [smem:[#allocation0]]
  $region73: #{tpu_custom_call.1} parent=0
    _
  %s11 = ssub.s32 1, %s9
  %s12 = scalar_select 0, %s11, %s9
  $region1: #{tpu_custom_call.1} parent=0
    #allocation4 [shape = 'u8[524288]{0}', space=vmem, size = 0x80000, scoped, tag = 'input window, operand 1, single buffered']
    #allocation5 [shape = 's32[2]{0}', space=sflag, size = 0x8, scoped, tag = 'scoped memory for tpu_custom_call.1']
    #allocation6 [shape = 's32[2]{0}', space=sflag, size = 0x8, scoped, tag = 'scoped memory for tpu_custom_call.1']
    #allocation7 [shape = 'u8[32768]{0}', space=vmem, size = 0x8000, scoped, tag = 'output window, operand 0']
    %13 = vsyncpa [#allocation5], 0
    %14 = vsyncpa [#allocation6], 0
    %s15 = scalar_lea.sflag [#allocation6], 1
    %16 = vsyncpa %s15, 0
    loop: start=0, step=1, limit=6
    $region2: #{tpu_custom_call.1} parent=1 // loop_pre_header
      _
    $region3: #{tpu_custom_call.1} parent=1 // loop_header
      %s18 = sphi 0, %s22
      %p19 = scmp.ge.s32.totalorder %s18, 6
      %s25 = sphi 0, %s37
      %s26 = sphi 0, %s33
      %s27 = sphi 0, %s25
      %s28 = sphi 0, %s26
      %s29 = sphi 0, %s27
      %s30 = sphi 0, %s28
      %s40 = sphi 0, %s42
      %s43 = sphi 0, %s40
      %s44 = sphi 0, %s43
      %s60 = sphi 0, %s44
      %s64 = sphi 0, %s64
      %s66 = sphi 0, %s64
      %s67 = sphi 0, %s66
      %s81 = sphi 0, %s67
      %s85 = sphi 0, %s85
      %s87 = sphi 0, %s85
      %s88 = sphi 0, %s87
      %s102 = sphi 0, %s88
      %s106 = sphi 0, %s106
      %s108 = sphi 0, %s106
      %s109 = sphi 0, %s108
      %s123 = sphi 0, %s109
      %s127 = sphi 0, %s127
      %s129 = sphi 0, %s127
      %s130 = sphi 0, %s129
      %s144 = sphi 0, %s130
      %s148 = sphi 0, %s148
      %s150 = sphi 0, %s148
      %s151 = sphi 0, %s150
      %s165 = sphi 0, %s151
      %s169 = sphi 0, %s169
      %s171 = sphi 0, %s169
      %s172 = sphi 0, %s171
      %s186 = sphi 0, %s172
      %s190 = sphi 0, %s190
      %s192 = sphi 0, %s190
      %s193 = sphi 0, %s192
      %s207 = sphi 0, %s193
      %s215 = sphi 0, %s217
      %s218 = sphi 0, %s215
      %s219 = sphi 0, %s218
      %s235 = sphi 0, %s219
    $region4: #{tpu_custom_call.1} parent=1 // loop_header_branch
      %21 = sbr.rel (%p19) target = $region8
    $region5: #{tpu_custom_call.1} parent=1 // loop_body
      %s23 = ssub.s32 %s18, 1
      %s24 = ssub.s32 %s18, 2
      %s31 = sadd.s32 1, %s26
      %p32 = scmp.ge.s32.totalorder %s31, 2
      %s33 = scalar_select %p32, 0, %s31
      %s34 = sadd.s32 1, %s25
      %s35 = scalar_select %p32, %s34, %s25
      %p36 = scmp.ge.s32.totalorder %s35, 2
      %s37 = scalar_select %p36, 0, %s35
      %s38 = ssub.s32 %s25, %s37
      %p39 = scmp.eq.s32.totalorder %s38, 0
      %s41 = sadd.s32 %s40, 1
      %s42 = scalar_select %p39, %s40, %s41
      %p45 = pneg %p39
      %p46 = scmp.eq.s32.totalorder %s18, 3
      %p47 = por %p45, %p46
      %p48 = scmp.ne.s32.totalorder %s40, %s43
      %p49 = scmp.eq.s32.totalorder %s18, 0
      %p50 = por %p48, %p49
      %p51 = scmp.ne.s32.totalorder %s40, %s43
      %p52 = scmp.eq.s32.totalorder %s23, 3
      %p53 = por %p51, %p52
      %p54 = scmp.ne.s32.totalorder %s43, %s44
      %p55 = scmp.eq.s32.totalorder %s23, 0
      %p56 = por %p54, %p55
      %p57 = scmp.ne.s32.totalorder %s43, %s44
      %p58 = scmp.eq.s32.totalorder %s24, 3
      %p59 = por %p57, %p58
      %p61 = scmp.ne.s32.totalorder %s44, %s60
      %p62 = scmp.eq.s32.totalorder %s24, 0
      %p63 = por %p61, %p62
      %s65 = sadd.s32 %s64, 1
      %p68 = scmp.eq.s32.totalorder %s18, 3
      %p69 = scmp.ne.s32.totalorder %s64, %s66
      %p70 = scmp.eq.s32.totalorder %s18, 0
      %p71 = por %p69, %p70
      %p72 = scmp.ne.s32.totalorder %s64, %s66
      %p73 = scmp.eq.s32.totalorder %s23, 3
      %p74 = por %p72, %p73
      %p75 = scmp.ne.s32.totalorder %s66, %s67
      %p76 = scmp.eq.s32.totalorder %s23, 0
      %p77 = por %p75, %p76
      %p78 = scmp.ne.s32.totalorder %s66, %s67
      %p79 = scmp.eq.s32.totalorder %s24, 3
      %p80 = por %p78, %p79
      %p82 = scmp.ne.s32.totalorder %s67, %s81
      %p83 = scmp.eq.s32.totalorder %s24, 0
      %p84 = por %p82, %p83
      %s86 = sadd.s32 %s85, 1
      %p89 = scmp.eq.s32.totalorder %s18, 3
      %p90 = scmp.ne.s32.totalorder %s85, %s87
      %p91 = scmp.eq.s32.totalorder %s18, 0
      %p92 = por %p90, %p91
      %p93 = scmp.ne.s32.totalorder %s85, %s87
      %p94 = scmp.eq.s32.totalorder %s23, 3
      %p95 = por %p93, %p94
      %p96 = scmp.ne.s32.totalorder %s87, %s88
      %p97 = scmp.eq.s32.totalorder %s23, 0
      %p98 = por %p96, %p97
      %p99 = scmp.ne.s32.totalorder %s87, %s88
      %p100 = scmp.eq.s32.totalorder %s24, 3
      %p101 = por %p99, %p100
      %p103 = scmp.ne.s32.totalorder %s88, %s102
      %p104 = scmp.eq.s32.totalorder %s24, 0
      %p105 = por %p103, %p104
      %s107 = sadd.s32 %s106, 1
      %p110 = scmp.eq.s32.totalorder %s18, 3
      %p111 = scmp.ne.s32.totalorder %s106, %s108
      %p112 = scmp.eq.s32.totalorder %s18, 0
      %p113 = por %p111, %p112
      %p114 = scmp.ne.s32.totalorder %s106, %s108
      %p115 = scmp.eq.s32.totalorder %s23, 3
      %p116 = por %p114, %p115
      %p117 = scmp.ne.s32.totalorder %s108, %s109
      %p118 = scmp.eq.s32.totalorder %s23, 0
      %p119 = por %p117, %p118
      %p120 = scmp.ne.s32.totalorder %s108, %s109
      %p121 = scmp.eq.s32.totalorder %s24, 3
      %p122 = por %p120, %p121
      %p124 = scmp.ne.s32.totalorder %s109, %s123
      %p125 = scmp.eq.s32.totalorder %s24, 0
      %p126 = por %p124, %p125
      %s128 = sadd.s32 %s127, 1
      %p131 = scmp.eq.s32.totalorder %s18, 3
      %p132 = scmp.ne.s32.totalorder %s127, %s129
      %p133 = scmp.eq.s32.totalorder %s18, 0
      %p134 = por %p132, %p133
      %p135 = scmp.ne.s32.totalorder %s127, %s129
      %p136 = scmp.eq.s32.totalorder %s23, 3
      %p137 = por %p135, %p136
      %p138 = scmp.ne.s32.totalorder %s129, %s130
      %p139 = scmp.eq.s32.totalorder %s23, 0
      %p140 = por %p138, %p139
      %p141 = scmp.ne.s32.totalorder %s129, %s130
      %p142 = scmp.eq.s32.totalorder %s24, 3
      %p143 = por %p141, %p142
      %p145 = scmp.ne.s32.totalorder %s130, %s144
      %p146 = scmp.eq.s32.totalorder %s24, 0
      %p147 = por %p145, %p146
      %s149 = sadd.s32 %s148, 1
      %p152 = scmp.eq.s32.totalorder %s18, 3
      %p153 = scmp.ne.s32.totalorder %s148, %s150
      %p154 = scmp.eq.s32.totalorder %s18, 0
      %p155 = por %p153, %p154
      %p156 = scmp.ne.s32.totalorder %s148, %s150
      %p157 = scmp.eq.s32.totalorder %s23, 3
      %p158 = por %p156, %p157
      %p159 = scmp.ne.s32.totalorder %s150, %s151
      %p160 = scmp.eq.s32.totalorder %s23, 0
      %p161 = por %p159, %p160
      %p162 = scmp.ne.s32.totalorder %s150, %s151
      %p163 = scmp.eq.s32.totalorder %s24, 3
      %p164 = por %p162, %p163
      %p166 = scmp.ne.s32.totalorder %s151, %s165
      %p167 = scmp.eq.s32.totalorder %s24, 0
      %p168 = por %p166, %p167
      %s170 = sadd.s32 %s169, 1
      %p173 = scmp.eq.s32.totalorder %s18, 3
      %p174 = scmp.ne.s32.totalorder %s169, %s171
      %p175 = scmp.eq.s32.totalorder %s18, 0
      %p176 = por %p174, %p175
      %p177 = scmp.ne.s32.totalorder %s169, %s171
      %p178 = scmp.eq.s32.totalorder %s23, 3
      %p179 = por %p177, %p178
      %p180 = scmp.ne.s32.totalorder %s171, %s172
      %p181 = scmp.eq.s32.totalorder %s23, 0
      %p182 = por %p180, %p181
      %p183 = scmp.ne.s32.totalorder %s171, %s172
      %p184 = scmp.eq.s32.totalorder %s24, 3
      %p185 = por %p183, %p184
      %p187 = scmp.ne.s32.totalorder %s172, %s186
      %p188 = scmp.eq.s32.totalorder %s24, 0
      %p189 = por %p187, %p188
      %s191 = sadd.s32 %s190, 1
      %p194 = scmp.eq.s32.totalorder %s18, 3
      %p195 = scmp.ne.s32.totalorder %s190, %s192
      %p196 = scmp.eq.s32.totalorder %s18, 0
      %p197 = por %p195, %p196
      %p198 = scmp.ne.s32.totalorder %s190, %s192
      %p199 = scmp.eq.s32.totalorder %s23, 3
      %p200 = por %p198, %p199
      %p201 = scmp.ne.s32.totalorder %s192, %s193
      %p202 = scmp.eq.s32.totalorder %s23, 0
      %p203 = por %p201, %p202
      %p204 = scmp.ne.s32.totalorder %s192, %s193
      %p205 = scmp.eq.s32.totalorder %s24, 3
      %p206 = por %p204, %p205
      %p208 = scmp.ne.s32.totalorder %s193, %s207
      %p209 = scmp.eq.s32.totalorder %s24, 0
      %p210 = por %p208, %p209
      %s211 = ssub.s32 %s25, %s37
      %s212 = ssub.s32 %s26, %s33
      %s213 = sor.u32 %s211, %s212
      %p214 = scmp.eq.s32.totalorder %s213, 0
      %s216 = sadd.s32 %s215, 1
      %s217 = scalar_select %p214, %s215, %s216
      %p220 = pneg %p214
      %p221 = scmp.eq.s32.totalorder %s18, 3
      %p222 = por %p220, %p221
      %p223 = scmp.ne.s32.totalorder %s215, %s218
      %p224 = scmp.eq.s32.totalorder %s18, 0
      %p225 = por %p223, %p224
      %p226 = scmp.ne.s32.totalorder %s215, %s218
      %p227 = scmp.eq.s32.totalorder %s23, 3
      %p228 = por %p226, %p227
      %p229 = scmp.ne.s32.totalorder %s218, %s219
      %p230 = scmp.eq.s32.totalorder %s23, 0
      %p231 = por %p229, %p230
      %p232 = scmp.ne.s32.totalorder %s218, %s219
      %p233 = scmp.eq.s32.totalorder %s24, 3
      %p234 = por %p232, %p233
      %p236 = scmp.ne.s32.totalorder %s219, %s235
      %p237 = scmp.eq.s32.totalorder %s24, 0
      %p238 = por %p236, %p237
      %p239 = scmp.le.s32.totalorder 1, %s18
      %p240 = scmp.lt.s32.totalorder %s18, 5
      %p241 = pnand %p239, %p240
      %p242 = pneg %p241
      // Predicated region
      $region9: #{tpu_custom_call.1} parent=5 // pred_check
        _
      $region10: #{tpu_custom_call.1} parent=5 // pred_check_branch
        %244 = sbr.rel (%p241) target = $region12
      $region11: #{tpu_custom_call.1} parent=5 // pred_region
        %s245 = ssub.s32 %s18, 1
        // Predicated region
        $region13: #{tpu_custom_call.1} parent=11 // pred_check
          %p246 = pneg %p77
        $region14: #{tpu_custom_call.1} parent=11 // pred_check_branch
          %248 = sbr.rel (%p246) target = $region16
        $region15: #{tpu_custom_call.1} parent=11 // pred_region
          %s250 = ssub.s32 16384, 16384
          %251 = vsyncadd [#allocation5], %s250
          %s252 = sshll.u32 [#allocation4], 4
          %s253 = int_to_ptr.vmem [resolvable:$true] %s252
          %258 = dma.hbm_to_vmem [thread:$0]  %s1, 16384, %s253, [#allocation5], 512, 512, 32
        $region16: #{tpu_custom_call.1} parent=11 // pred_fallthru
          _
        // Predicated region
        $region17: #{tpu_custom_call.1} parent=11 // pred_check
          %p259 = pneg %p98
        $region18: #{tpu_custom_call.1} parent=11 // pred_check_branch
          %261 = sbr.rel (%p259) target = $region20
        $region19: #{tpu_custom_call.1} parent=11 // pred_region
          _
        $region20: #{tpu_custom_call.1} parent=11 // pred_fallthru
          _
        // Predicated region
        $region21: #{tpu_custom_call.1} parent=11 // pred_check
          %p262 = pneg %p119
        $region22: #{tpu_custom_call.1} parent=11 // pred_check_branch
          %264 = sbr.rel (%p262) target = $region24
        $region23: #{tpu_custom_call.1} parent=11 // pred_region
          _
        $region24: #{tpu_custom_call.1} parent=11 // pred_fallthru
          _
        // Predicated region
        $region25: #{tpu_custom_call.1} parent=11 // pred_check
          %p265 = pneg %p140
        $region26: #{tpu_custom_call.1} parent=11 // pred_check_branch
          %267 = sbr.rel (%p265) target = $region28
        $region27: #{tpu_custom_call.1} parent=11 // pred_region
          _
        $region28: #{tpu_custom_call.1} parent=11 // pred_fallthru
          _
        // Predicated region
        $region29: #{tpu_custom_call.1} parent=11 // pred_check
          %p268 = pneg %p161
        $region30: #{tpu_custom_call.1} parent=11 // pred_check_branch
          %270 = sbr.rel (%p268) target = $region32
        $region31: #{tpu_custom_call.1} parent=11 // pred_region
          _
        $region32: #{tpu_custom_call.1} parent=11 // pred_fallthru
          _
        // Predicated region
        $region33: #{tpu_custom_call.1} parent=11 // pred_check
          %p271 = pneg %p182
        $region34: #{tpu_custom_call.1} parent=11 // pred_check_branch
          %273 = sbr.rel (%p271) target = $region36
        $region35: #{tpu_custom_call.1} parent=11 // pred_region
          _
        $region36: #{tpu_custom_call.1} parent=11 // pred_fallthru
          _
        // Predicated region
        $region37: #{tpu_custom_call.1} parent=11 // pred_check
          %p274 = pneg %p203
        $region38: #{tpu_custom_call.1} parent=11 // pred_check_branch
          %276 = sbr.rel (%p274) target = $region40
        $region39: #{tpu_custom_call.1} parent=11 // pred_region
          _
        $region40: #{tpu_custom_call.1} parent=11 // pred_fallthru
          _
      $region12: #{tpu_custom_call.1} parent=5 // pred_fallthru
        _
      %p277 = scmp.lt.s32.totalorder %s18, 4
      // Predicated region
      $region41: #{tpu_custom_call.1} parent=5 // pred_check
        %p278 = pneg %p277
      $region42: #{tpu_custom_call.1} parent=5 // pred_check_branch
        %280 = sbr.rel (%p278) target = $region44
      $region43: #{tpu_custom_call.1} parent=5 // pred_region
        // Predicated region
        $region45: #{tpu_custom_call.1} parent=43 // pred_check
          %p281 = pneg %p50
        $region46: #{tpu_custom_call.1} parent=43 // pred_check_branch
          %283 = sbr.rel (%p281) target = $region48
        $region47: #{tpu_custom_call.1} parent=43 // pred_region
          %p284 = scmp.lt.s32.totalorder %s25, 1
          %s285 = scalar_select %p284, %s25, 1
          %s286 = smul.addr %s285, 2
          %s287 = smul.addr %s286, 4
          %s288 = scalar_lea.vmem %s0, %s287
        $region48: #{tpu_custom_call.1} parent=43 // pred_fallthru
          _
      $region44: #{tpu_custom_call.1} parent=5 // pred_fallthru
        _
      %p289 = scmp.le.s32.totalorder 1, %s18
      %p290 = scmp.lt.s32.totalorder %s18, 5
      %p291 = pnand %p289, %p290
      %p292 = pneg %p291
      // Predicated region
      $region49: #{tpu_custom_call.1} parent=5 // pred_check
        _
      $region50: #{tpu_custom_call.1} parent=5 // pred_check_branch
        %294 = sbr.rel (%p291) target = $region52
      $region51: #{tpu_custom_call.1} parent=5 // pred_region
        %s295 = ssub.s32 %s18, 1
        // Predicated region
        $region53: #{tpu_custom_call.1} parent=51 // pred_check
          %p296 = pneg %p77
        $region54: #{tpu_custom_call.1} parent=51 // pred_check_branch
          %298 = sbr.rel (%p296) target = $region56
        $region55: #{tpu_custom_call.1} parent=51 // pred_region
          %299 = dma.done [#allocation5], 16384
        $region56: #{tpu_custom_call.1} parent=51 // pred_fallthru
          _
        %p300 = scmp.lt.s32.totalorder %s27, 1
        %s301 = scalar_select %p300, %s27, 1
        %s302 = smul.addr %s301, 2
        %s303 = smul.addr %s302, 4
        %s304 = scalar_lea.vmem %s0, %s303
        %p305 = pneg %p56
        %p306 = pneg %p53
        %p307 = pneg %p77
        %p308 = pneg %p74
        %p309 = pneg %p98
        %p310 = pneg %p95
        %p311 = pneg %p119
        %p312 = pneg %p116
        %p313 = pneg %p140
        %p314 = pneg %p137
        %p315 = pneg %p161
        %p316 = pneg %p158
        %p317 = pneg %p182
        %p318 = pneg %p179
        %p319 = pneg %p203
        %p320 = pneg %p200
        %p321 = pneg %p231
        %p322 = pneg %p228
        %s323 = sand.u32 %s218, 1
        %s324 = scalar_lea.sflag [#allocation6], %s323
        %s325 = sand.u32 %s218, 1
        %s326 = smul.addr %s325, 32
        %s327 = scalar_lea.vmem [#allocation7], %s326
        %p328 = scmp.lt.s32.totalorder %s27, 1
        %s329 = scalar_select %p328, %s27, 1
        %s330 = smul.addr %s329, 2
        %s331 = smul.addr %s330, 4
        %s332 = scalar_lea.vmem %s0, %s331
        %s333 = smul.u32 4, %s28
        %p335 = scmp.eq.s32.totalorder %s28, 0
        // Predicated region
        $region57: #{tpu_custom_call.1} parent=51 // pred_check
          %p336 = pneg %p335
        $region58: #{tpu_custom_call.1} parent=51 // pred_check_branch
          %338 = sbr.rel (%p336) target = $region60
        $region59: #{tpu_custom_call.1} parent=51 // pred_region
          %v339 = vld [vmem:[%s332] sm:$0xff]
          %v340 = vld [vmem:[%s2] sm:$0xf]
          %342 = vset.pattern.permute.xlu0 0
          %343 = vperm.xlu0 %342, %v340
          %v344 = vpop.permute.xlu0 %343
          %v346 = vunpack.c.l.s4 839922192
          %v347 = vunpack.c.0.s8 %v346
          %v348 = vlaneseq
          %v349 = vshrl.u32 %v348, 7
          %v350 = vsub.s32 %v347, %v349
          %v351 = vrot.slane %v344, %v350
          %v353 = vmul.f32 %v339, %v351
          %v354 = vld [vmem:[%s3] sm:$0xf]
          %356 = vset.pattern.permute.xlu0 0
          %357 = vperm.xlu0 %356, %v354
          %v358 = vpop.permute.xlu0 %357
          %v360 = vunpack.c.l.s4 839922192
          %v361 = vunpack.c.0.s8 %v360
          %v362 = vlaneseq
          %v363 = vshrl.u32 %v362, 7
          %v364 = vsub.s32 %v361, %v363
          %v365 = vrot.slane %v358, %v364
          %v367 = vadd.f32 %v353, %v365
          %v368 = vmax.f32 %v367, 0.0
          %v369 = vld [vmem:[%s4] sm:$0xf]
          %371 = vset.pattern.permute.xlu0 0
          %372 = vperm.xlu0 %371, %v369
          %v373 = vpop.permute.xlu0 %372
          %v375 = vunpack.c.l.s4 839922192
          %v376 = vunpack.c.0.s8 %v375
          %v377 = vlaneseq
          %v378 = vshrl.u32 %v377, 7
          %v379 = vsub.s32 %v376, %v378
          %v380 = vrot.slane %v373, %v379
          %v382 = vmul.f32 %v368, %v380
          %v383 = vld [vmem:[%s5] sm:$0xf]
          %385 = vset.pattern.permute.xlu0 0
          %386 = vperm.xlu0 %385, %v383
          %v387 = vpop.permute.xlu0 %386
          %v389 = vunpack.c.l.s4 839922192
          %v390 = vunpack.c.0.s8 %v389
          %v391 = vlaneseq
          %v392 = vshrl.u32 %v391, 7
          %v393 = vsub.s32 %v390, %v392
          %v394 = vrot.slane %v387, %v393
          %v396 = vadd.f32 %v382, %v394
          %v397 = vmax.f32 %v396, 0.0
          %v399 = vcombine.high %v397, %v397
          %v402 = vcombine.low %v339, %v339
          %vm404 = vcmask 1043456
          %v405 = vsel %vm404, %v397, %v402
          %v406 = vsel %vm404, %v399, %v339
          %v407 = vpack.c.bf16 %v405, %v405
          %v408 = vpack.c.bf16 %v406, %v406
          %v409 = vld [vmem:[#allocation4] sm:$0xff]
          %v410 = vld [vmem:[#allocation4 + $0x8] sm:$0xff]
          %v411 = vld [vmem:[#allocation4 + $0x10] sm:$0xff]
          %v412 = vld [vmem:[#allocation4 + $0x18] sm:$0xff]
          %v413 = vld [vmem:[#allocation4 + $0x20] sm:$0xff]
          %v414 = vld [vmem:[#allocation4 + $0x28] sm:$0xff]
          %v415 = vld [vmem:[#allocation4 + $0x30] sm:$0xff]
          %v416 = vld [vmem:[#allocation4 + $0x38] sm:$0xff]
          %v417 = vld [vmem:[#allocation4 + $0x40] sm:$0xff]
          %v418 = vld [vmem:[#allocation4 + $0x48] sm:$0xff]
          %v419 = vld [vmem:[#allocation4 + $0x50] sm:$0xff]
          %v420 = vld [vmem:[#allocation4 + $0x58] sm:$0xff]
          %v421 = vld [vmem:[#allocation4 + $0x60] sm:$0xff]
          %v422 = vld [vmem:[#allocation4 + $0x68] sm:$0xff]
          %v423 = vld [vmem:[#allocation4 + $0x70] sm:$0xff]
          %v424 = vld [vmem:[#allocation4 + $0x78] sm:$0xff]
          %v425 = vld [vmem:[#allocation4 + $0x80] sm:$0xff]
          %v426 = vld [vmem:[#allocation4 + $0x88] sm:$0xff]
          %v427 = vld [vmem:[#allocation4 + $0x90] sm:$0xff]
          %v428 = vld [vmem:[#allocation4 + $0x98] sm:$0xff]
          %v429 = vld [vmem:[#allocation4 + $0xa0] sm:$0xff]
          %v430 = vld [vmem:[#allocation4 + $0xa8] sm:$0xff]
          %v431 = vld [vmem:[#allocation4 + $0xb0] sm:$0xff]
          %v432 = vld [vmem:[#allocation4 + $0xb8] sm:$0xff]
          %v433 = vld [vmem:[#allocation4 + $0xc0] sm:$0xff]
          %v434 = vld [vmem:[#allocation4 + $0xc8] sm:$0xff]
          %v435 = vld [vmem:[#allocation4 + $0xd0] sm:$0xff]
          %v436 = vld [vmem:[#allocation4 + $0xd8] sm:$0xff]
          %v437 = vld [vmem:[#allocation4 + $0xe0] sm:$0xff]
          %v438 = vld [vmem:[#allocation4 + $0xe8] sm:$0xff]
          %v439 = vld [vmem:[#allocation4 + $0xf0] sm:$0xff]
          %v440 = vld [vmem:[#allocation4 + $0xf8] sm:$0xff]
          %v441 = vld [vmem:[#allocation4 + $0x100] sm:$0xff]
          %v442 = vld [vmem:[#allocation4 + $0x108] sm:$0xff]
          %v443 = vld [vmem:[#allocation4 + $0x110] sm:$0xff]
          %v444 = vld [vmem:[#allocation4 + $0x118] sm:$0xff]
          %v445 = vld [vmem:[#allocation4 + $0x120] sm:$0xff]
          %v446 = vld [vmem:[#allocation4 + $0x128] sm:$0xff]
          %v447 = vld [vmem:[#allocation4 + $0x130] sm:$0xff]
          %v448 = vld [vmem:[#allocation4 + $0x138] sm:$0xff]
          %v449 = vld [vmem:[#allocation4 + $0x140] sm:$0xff]
          %v450 = vld [vmem:[#allocation4 + $0x148] sm:$0xff]
          %v451 = vld [vmem:[#allocation4 + $0x150] sm:$0xff]
          %v452 = vld [vmem:[#allocation4 + $0x158] sm:$0xff]
          %v453 = vld [vmem:[#allocation4 + $0x160] sm:$0xff]
          %v454 = vld [vmem:[#allocation4 + $0x168] sm:$0xff]
          %v455 = vld [vmem:[#allocation4 + $0x170] sm:$0xff]
          %v456 = vld [vmem:[#allocation4 + $0x178] sm:$0xff]
          %v457 = vld [vmem:[#allocation4 + $0x180] sm:$0xff]
          %v458 = vld [vmem:[#allocation4 + $0x188] sm:$0xff]
          %v459 = vld [vmem:[#allocation4 + $0x190] sm:$0xff]
          %v460 = vld [vmem:[#allocation4 + $0x198] sm:$0xff]
          %v461 = vld [vmem:[#allocation4 + $0x1a0] sm:$0xff]
          %v462 = vld [vmem:[#allocation4 + $0x1a8] sm:$0xff]
          %v463 = vld [vmem:[#allocation4 + $0x1b0] sm:$0xff]
          %v464 = vld [vmem:[#allocation4 + $0x1b8] sm:$0xff]
          %v465 = vld [vmem:[#allocation4 + $0x1c0] sm:$0xff]
          %v466 = vld [vmem:[#allocation4 + $0x1c8] sm:$0xff]
          %v467 = vld [vmem:[#allocation4 + $0x1d0] sm:$0xff]
          %v468 = vld [vmem:[#allocation4 + $0x1d8] sm:$0xff]
          %v469 = vld [vmem:[#allocation4 + $0x1e0] sm:$0xff]
          %v470 = vld [vmem:[#allocation4 + $0x1e8] sm:$0xff]
          %v471 = vld [vmem:[#allocation4 + $0x1f0] sm:$0xff]
          %v472 = vld [vmem:[#allocation4 + $0x1f8] sm:$0xff]
          %v473 = vld [vmem:[#allocation4 + $0x200] sm:$0xff]
          %v474 = vld [vmem:[#allocation4 + $0x208] sm:$0xff]
          %v475 = vld [vmem:[#allocation4 + $0x210] sm:$0xff]
          %v476 = vld [vmem:[#allocation4 + $0x218] sm:$0xff]
          %v477 = vld [vmem:[#allocation4 + $0x220] sm:$0xff]
          %v478 = vld [vmem:[#allocation4 + $0x228] sm:$0xff]
          %v479 = vld [vmem:[#allocation4 + $0x230] sm:$0xff]
          %v480 = vld [vmem:[#allocation4 + $0x238] sm:$0xff]
          %v481 = vld [vmem:[#allocation4 + $0x240] sm:$0xff]
          %v482 = vld [vmem:[#allocation4 + $0x248] sm:$0xff]
          %v483 = vld [vmem:[#allocation4 + $0x250] sm:$0xff]
          %v484 = vld [vmem:[#allocation4 + $0x258] sm:$0xff]
          %v485 = vld [vmem:[#allocation4 + $0x260] sm:$0xff]
          %v486 = vld [vmem:[#allocation4 + $0x268] sm:$0xff]
          %v487 = vld [vmem:[#allocation4 + $0x270] sm:$0xff]
          %v488 = vld [vmem:[#allocation4 + $0x278] sm:$0xff]
          %v489 = vld [vmem:[#allocation4 + $0x280] sm:$0xff]
          %v490 = vld [vmem:[#allocation4 + $0x288] sm:$0xff]
          %v491 = vld [vmem:[#allocation4 + $0x290] sm:$0xff]
          %v492 = vld [vmem:[#allocation4 + $0x298] sm:$0xff]
          %v493 = vld [vmem:[#allocation4 + $0x2a0] sm:$0xff]
          %v494 = vld [vmem:[#allocation4 + $0x2a8] sm:$0xff]
          %v495 = vld [vmem:[#allocation4 + $0x2b0] sm:$0xff]
          %v496 = vld [vmem:[#allocation4 + $0x2b8] sm:$0xff]
          %v497 = vld [vmem:[#allocation4 + $0x2c0] sm:$0xff]
          %v498 = vld [vmem:[#allocation4 + $0x2c8] sm:$0xff]
          %v499 = vld [vmem:[#allocation4 + $0x2d0] sm:$0xff]
          %v500 = vld [vmem:[#allocation4 + $0x2d8] sm:$0xff]
          %v501 = vld [vmem:[#allocation4 + $0x2e0] sm:$0xff]
          %v502 = vld [vmem:[#allocation4 + $0x2e8] sm:$0xff]
          %v503 = vld [vmem:[#allocation4 + $0x2f0] sm:$0xff]
          %v504 = vld [vmem:[#allocation4 + $0x2f8] sm:$0xff]
          %v505 = vld [vmem:[#allocation4 + $0x300] sm:$0xff]
          %v506 = vld [vmem:[#allocation4 + $0x308] sm:$0xff]
          %v507 = vld [vmem:[#allocation4 + $0x310] sm:$0xff]
          %v508 = vld [vmem:[#allocation4 + $0x318] sm:$0xff]
          %v509 = vld [vmem:[#allocation4 + $0x320] sm:$0xff]
          %v510 = vld [vmem:[#allocation4 + $0x328] sm:$0xff]
          %v511 = vld [vmem:[#allocation4 + $0x330] sm:$0xff]
          %v512 = vld [vmem:[#allocation4 + $0x338] sm:$0xff]
          %v513 = vld [vmem:[#allocation4 + $0x340] sm:$0xff]
          %v514 = vld [vmem:[#allocation4 + $0x348] sm:$0xff]
          %v515 = vld [vmem:[#allocation4 + $0x350] sm:$0xff]
          %v516 = vld [vmem:[#allocation4 + $0x358] sm:$0xff]
          %v517 = vld [vmem:[#allocation4 + $0x360] sm:$0xff]
          %v518 = vld [vmem:[#allocation4 + $0x368] sm:$0xff]
          %v519 = vld [vmem:[#allocation4 + $0x370] sm:$0xff]
          %v520 = vld [vmem:[#allocation4 + $0x378] sm:$0xff]
          %v521 = vld [vmem:[#allocation4 + $0x380] sm:$0xff]
          %v522 = vld [vmem:[#allocation4 + $0x388] sm:$0xff]
          %v523 = vld [vmem:[#allocation4 + $0x390] sm:$0xff]
          %v524 = vld [vmem:[#allocation4 + $0x398] sm:$0xff]
          %v525 = vld [vmem:[#allocation4 + $0x3a0] sm:$0xff]
          %v526 = vld [vmem:[#allocation4 + $0x3a8] sm:$0xff]
          %v527 = vld [vmem:[#allocation4 + $0x3b0] sm:$0xff]
          %v528 = vld [vmem:[#allocation4 + $0x3b8] sm:$0xff]
          %v529 = vld [vmem:[#allocation4 + $0x3c0] sm:$0xff]
          %v530 = vld [vmem:[#allocation4 + $0x3c8] sm:$0xff]
          %v531 = vld [vmem:[#allocation4 + $0x3d0] sm:$0xff]
          %v532 = vld [vmem:[#allocation4 + $0x3d8] sm:$0xff]
          %v533 = vld [vmem:[#allocation4 + $0x3e0] sm:$0xff]
          %v534 = vld [vmem:[#allocation4 + $0x3e8] sm:$0xff]
          %v535 = vld [vmem:[#allocation4 + $0x3f0] sm:$0xff]
          %v536 = vld [vmem:[#allocation4 + $0x3f8] sm:$0xff]
          %v665 = vunpack.c.l.b16 %v409
          %v666 = vunpack.c.h.b16 %v409
          %v667 = vunpack.c.l.b16 %v410
          %v668 = vunpack.c.h.b16 %v410
          %v669 = vunpack.c.l.b16 %v411
          %v670 = vunpack.c.h.b16 %v411
          %v671 = vunpack.c.l.b16 %v412
          %v672 = vunpack.c.h.b16 %v412
          %v673 = vunpack.c.l.b16 %v413
          %v674 = vunpack.c.h.b16 %v413
          %v675 = vunpack.c.l.b16 %v414
          %v676 = vunpack.c.h.b16 %v414
          %v677 = vunpack.c.l.b16 %v415
          %v678 = vunpack.c.h.b16 %v415
          %v679 = vunpack.c.l.b16 %v416
          %v680 = vunpack.c.h.b16 %v416
          %v681 = vunpack.c.l.b16 %v417
          %v682 = vunpack.c.h.b16 %v417
          %v683 = vunpack.c.l.b16 %v418
          %v684 = vunpack.c.h.b16 %v418
          %v685 = vunpack.c.l.b16 %v419
          %v686 = vunpack.c.h.b16 %v419
          %v687 = vunpack.c.l.b16 %v420
          %v688 = vunpack.c.h.b16 %v420
          %v689 = vunpack.c.l.b16 %v421
          %v690 = vunpack.c.h.b16 %v421
          %v691 = vunpack.c.l.b16 %v422
          %v692 = vunpack.c.h.b16 %v422
          %v693 = vunpack.c.l.b16 %v423
          %v694 = vunpack.c.h.b16 %v423
          %v695 = vunpack.c.l.b16 %v424
          %v696 = vunpack.c.h.b16 %v424
          %v697 = vunpack.c.l.b16 %v425
          %v698 = vunpack.c.h.b16 %v425
          %v699 = vunpack.c.l.b16 %v426
          %v700 = vunpack.c.h.b16 %v426
          %v701 = vunpack.c.l.b16 %v427
          %v702 = vunpack.c.h.b16 %v427
          %v703 = vunpack.c.l.b16 %v428
          %v704 = vunpack.c.h.b16 %v428
          %v705 = vunpack.c.l.b16 %v429
          %v706 = vunpack.c.h.b16 %v429
          %v707 = vunpack.c.l.b16 %v430
          %v708 = vunpack.c.h.b16 %v430
          %v709 = vunpack.c.l.b16 %v431
          %v710 = vunpack.c.h.b16 %v431
          %v711 = vunpack.c.l.b16 %v432
          %v712 = vunpack.c.h.b16 %v432
          %v713 = vunpack.c.l.b16 %v433
          %v714 = vunpack.c.h.b16 %v433
          %v715 = vunpack.c.l.b16 %v434
          %v716 = vunpack.c.h.b16 %v434
          %v717 = vunpack.c.l.b16 %v435
          %v718 = vunpack.c.h.b16 %v435
          %v719 = vunpack.c.l.b16 %v436
          %v720 = vunpack.c.h.b16 %v436
          %v721 = vunpack.c.l.b16 %v437
          %v722 = vunpack.c.h.b16 %v437
          %v723 = vunpack.c.l.b16 %v438
          %v724 = vunpack.c.h.b16 %v438
          %v725 = vunpack.c.l.b16 %v439
          %v726 = vunpack.c.h.b16 %v439
          %v727 = vunpack.c.l.b16 %v440
          %v728 = vunpack.c.h.b16 %v440
          %v729 = vunpack.c.l.b16 %v441
          %v730 = vunpack.c.h.b16 %v441
          %v731 = vunpack.c.l.b16 %v442
          %v732 = vunpack.c.h.b16 %v442
          %v733 = vunpack.c.l.b16 %v443
          %v734 = vunpack.c.h.b16 %v443
          %v735 = vunpack.c.l.b16 %v444
          %v736 = vunpack.c.h.b16 %v444
          %v737 = vunpack.c.l.b16 %v445
          %v738 = vunpack.c.h.b16 %v445
          %v739 = vunpack.c.l.b16 %v446
          %v740 = vunpack.c.h.b16 %v446
          %v741 = vunpack.c.l.b16 %v447
          %v742 = vunpack.c.h.b16 %v447
          %v743 = vunpack.c.l.b16 %v448
          %v744 = vunpack.c.h.b16 %v448
          %v745 = vunpack.c.l.b16 %v449
          %v746 = vunpack.c.h.b16 %v449
          %v747 = vunpack.c.l.b16 %v450
          %v748 = vunpack.c.h.b16 %v450
          %v749 = vunpack.c.l.b16 %v451
          %v750 = vunpack.c.h.b16 %v451
          %v751 = vunpack.c.l.b16 %v452
          %v752 = vunpack.c.h.b16 %v452
          %v753 = vunpack.c.l.b16 %v453
          %v754 = vunpack.c.h.b16 %v453
          %v755 = vunpack.c.l.b16 %v454
          %v756 = vunpack.c.h.b16 %v454
          %v757 = vunpack.c.l.b16 %v455
          %v758 = vunpack.c.h.b16 %v455
          %v759 = vunpack.c.l.b16 %v456
          %v760 = vunpack.c.h.b16 %v456
          %v761 = vunpack.c.l.b16 %v457
          %v762 = vunpack.c.h.b16 %v457
          %v763 = vunpack.c.l.b16 %v458
          %v764 = vunpack.c.h.b16 %v458
          %v765 = vunpack.c.l.b16 %v459
          %v766 = vunpack.c.h.b16 %v459
          %v767 = vunpack.c.l.b16 %v460
          %v768 = vunpack.c.h.b16 %v460
          %v769 = vunpack.c.l.b16 %v461
          %v770 = vunpack.c.h.b16 %v461
          %v771 = vunpack.c.l.b16 %v462
          %v772 = vunpack.c.h.b16 %v462
          %v773 = vunpack.c.l.b16 %v463
          %v774 = vunpack.c.h.b16 %v463
          %v775 = vunpack.c.l.b16 %v464
          %v776 = vunpack.c.h.b16 %v464
          %v777 = vunpack.c.l.b16 %v465
          %v778 = vunpack.c.h.b16 %v465
          %v779 = vunpack.c.l.b16 %v466
          %v780 = vunpack.c.h.b16 %v466
          %v781 = vunpack.c.l.b16 %v467
          %v782 = vunpack.c.h.b16 %v467
          %v783 = vunpack.c.l.b16 %v468
          %v784 = vunpack.c.h.b16 %v468
          %v785 = vunpack.c.l.b16 %v469
          %v786 = vunpack.c.h.b16 %v469
          %v787 = vunpack.c.l.b16 %v470
          %v788 = vunpack.c.h.b16 %v470
          %v789 = vunpack.c.l.b16 %v471
          %v790 = vunpack.c.h.b16 %v471
          %v791 = vunpack.c.l.b16 %v472
          %v792 = vunpack.c.h.b16 %v472
          %v793 = vunpack.c.l.b16 %v473
          %v794 = vunpack.c.h.b16 %v473
          %v795 = vunpack.c.l.b16 %v474
          %v796 = vunpack.c.h.b16 %v474
          %v797 = vunpack.c.l.b16 %v475
          %v798 = vunpack.c.h.b16 %v475
          %v799 = vunpack.c.l.b16 %v476
          %v800 = vunpack.c.h.b16 %v476
          %v801 = vunpack.c.l.b16 %v477
          %v802 = vunpack.c.h.b16 %v477
          %v803 = vunpack.c.l.b16 %v478
          %v804 = vunpack.c.h.b16 %v478
          %v805 = vunpack.c.l.b16 %v479
          %v806 = vunpack.c.h.b16 %v479
          %v807 = vunpack.c.l.b16 %v480
          %v808 = vunpack.c.h.b16 %v480
          %v809 = vunpack.c.l.b16 %v481
          %v810 = vunpack.c.h.b16 %v481
          %v811 = vunpack.c.l.b16 %v482
          %v812 = vunpack.c.h.b16 %v482
          %v813 = vunpack.c.l.b16 %v483
          %v814 = vunpack.c.h.b16 %v483
          %v815 = vunpack.c.l.b16 %v484
          %v816 = vunpack.c.h.b16 %v484
          %v817 = vunpack.c.l.b16 %v485
          %v818 = vunpack.c.h.b16 %v485
          %v819 = vunpack.c.l.b16 %v486
          %v820 = vunpack.c.h.b16 %v486
          %v821 = vunpack.c.l.b16 %v487
          %v822 = vunpack.c.h.b16 %v487
          %v823 = vunpack.c.l.b16 %v488
          %v824 = vunpack.c.h.b16 %v488
          %v825 = vunpack.c.l.b16 %v489
          %v826 = vunpack.c.h.b16 %v489
          %v827 = vunpack.c.l.b16 %v490
          %v828 = vunpack.c.h.b16 %v490
          %v829 = vunpack.c.l.b16 %v491
          %v830 = vunpack.c.h.b16 %v491
          %v831 = vunpack.c.l.b16 %v492
          %v832 = vunpack.c.h.b16 %v492
          %v833 = vunpack.c.l.b16 %v493
          %v834 = vunpack.c.h.b16 %v493
          %v835 = vunpack.c.l.b16 %v494
          %v836 = vunpack.c.h.b16 %v494
          %v837 = vunpack.c.l.b16 %v495
          %v838 = vunpack.c.h.b16 %v495
          %v839 = vunpack.c.l.b16 %v496
          %v840 = vunpack.c.h.b16 %v496
          %v841 = vunpack.c.l.b16 %v497
          %v842 = vunpack.c.h.b16 %v497
          %v843 = vunpack.c.l.b16 %v498
          %v844 = vunpack.c.h.b16 %v498
          %v845 = vunpack.c.l.b16 %v499
          %v846 = vunpack.c.h.b16 %v499
          %v847 = vunpack.c.l.b16 %v500
          %v848 = vunpack.c.h.b16 %v500
          %v849 = vunpack.c.l.b16 %v501
          %v850 = vunpack.c.h.b16 %v501
          %v851 = vunpack.c.l.b16 %v502
          %v852 = vunpack.c.h.b16 %v502
          %v853 = vunpack.c.l.b16 %v503
          %v854 = vunpack.c.h.b16 %v503
          %v855 = vunpack.c.l.b16 %v504
          %v856 = vunpack.c.h.b16 %v504
          %v857 = vunpack.c.l.b16 %v505
          %v858 = vunpack.c.h.b16 %v505
          %v859 = vunpack.c.l.b16 %v506
          %v860 = vunpack.c.h.b16 %v506
          %v861 = vunpack.c.l.b16 %v507
          %v862 = vunpack.c.h.b16 %v507
          %v863 = vunpack.c.l.b16 %v508
          %v864 = vunpack.c.h.b16 %v508
          %v865 = vunpack.c.l.b16 %v509
          %v866 = vunpack.c.h.b16 %v509
          %v867 = vunpack.c.l.b16 %v510
          %v868 = vunpack.c.h.b16 %v510
          %v869 = vunpack.c.l.b16 %v511
          %v870 = vunpack.c.h.b16 %v511
          %v871 = vunpack.c.l.b16 %v512
          %v872 = vunpack.c.h.b16 %v512
          %v873 = vunpack.c.l.b16 %v513
          %v874 = vunpack.c.h.b16 %v513
          %v875 = vunpack.c.l.b16 %v514
          %v876 = vunpack.c.h.b16 %v514
          %v877 = vunpack.c.l.b16 %v515
          %v878 = vunpack.c.h.b16 %v515
          %v879 = vunpack.c.l.b16 %v516
          %v880 = vunpack.c.h.b16 %v516
          %v881 = vunpack.c.l.b16 %v517
          %v882 = vunpack.c.h.b16 %v517
          %v883 = vunpack.c.l.b16 %v518
          %v884 = vunpack.c.h.b16 %v518
          %v885 = vunpack.c.l.b16 %v519
          %v886 = vunpack.c.h.b16 %v519
          %v887 = vunpack.c.l.b16 %v520
          %v888 = vunpack.c.h.b16 %v520
          %v889 = vunpack.c.l.b16 %v521
          %v890 = vunpack.c.h.b16 %v521
          %v891 = vunpack.c.l.b16 %v522
          %v892 = vunpack.c.h.b16 %v522
          %v893 = vunpack.c.l.b16 %v523
          %v894 = vunpack.c.h.b16 %v523
          %v895 = vunpack.c.l.b16 %v524
          %v896 = vunpack.c.h.b16 %v524
          %v897 = vunpack.c.l.b16 %v525
          %v898 = vunpack.c.h.b16 %v525
          %v899 = vunpack.c.l.b16 %v526
          %v900 = vunpack.c.h.b16 %v526
          %v901 = vunpack.c.l.b16 %v527
          %v902 = vunpack.c.h.b16 %v527
          %v903 = vunpack.c.l.b16 %v528
          %v904 = vunpack.c.h.b16 %v528
          %v905 = vunpack.c.l.b16 %v529
          %v906 = vunpack.c.h.b16 %v529
          %v907 = vunpack.c.l.b16 %v530
          %v908 = vunpack.c.h.b16 %v530
          %v909 = vunpack.c.l.b16 %v531
          %v910 = vunpack.c.h.b16 %v531
          %v911 = vunpack.c.l.b16 %v532
          %v912 = vunpack.c.h.b16 %v532
          %v913 = vunpack.c.l.b16 %v533
          %v914 = vunpack.c.h.b16 %v533
          %v915 = vunpack.c.l.b16 %v534
          %v916 = vunpack.c.h.b16 %v534
          %v917 = vunpack.c.l.b16 %v535
          %v918 = vunpack.c.h.b16 %v535
          %v919 = vunpack.c.l.b16 %v536
          %v920 = vunpack.c.h.b16 %v536
          %v921 = vpack.c.b16 %v673, %v665
          %v922 = vpack.c.b16 %v674, %v666
          %v923 = vpack.c.b16 %v675, %v667
          %v924 = vpack.c.b16 %v676, %v668
          %v925 = vpack.c.b16 %v677, %v669
          %v926 = vpack.c.b16 %v678, %v670
          %v927 = vpack.c.b16 %v679, %v671
          %v928 = vpack.c.b16 %v680, %v672
          %v929 = vpack.c.b16 %v689, %v681
          %v930 = vpack.c.b16 %v690, %v682
          %v931 = vpack.c.b16 %v691, %v683
          %v932 = vpack.c.b16 %v692, %v684
          %v933 = vpack.c.b16 %v693, %v685
          %v934 = vpack.c.b16 %v694, %v686
          %v935 = vpack.c.b16 %v695, %v687
          %v936 = vpack.c.b16 %v696, %v688
          %v937 = vpack.c.b16 %v705, %v697
          %v938 = vpack.c.b16 %v706, %v698
          %v939 = vpack.c.b16 %v707, %v699
          %v940 = vpack.c.b16 %v708, %v700
          %v941 = vpack.c.b16 %v709, %v701
          %v942 = vpack.c.b16 %v710, %v702
          %v943 = vpack.c.b16 %v711, %v703
          %v944 = vpack.c.b16 %v712, %v704
          %v945 = vpack.c.b16 %v721, %v713
          %v946 = vpack.c.b16 %v722, %v714
          %v947 = vpack.c.b16 %v723, %v715
          %v948 = vpack.c.b16 %v724, %v716
          %v949 = vpack.c.b16 %v725, %v717
          %v950 = vpack.c.b16 %v726, %v718
          %v951 = vpack.c.b16 %v727, %v719
          %v952 = vpack.c.b16 %v728, %v720
          %v953 = vpack.c.b16 %v737, %v729
          %v954 = vpack.c.b16 %v738, %v730
          %v955 = vpack.c.b16 %v739, %v731
          %v956 = vpack.c.b16 %v740, %v732
          %v957 = vpack.c.b16 %v741, %v733
          %v958 = vpack.c.b16 %v742, %v734
          %v959 = vpack.c.b16 %v743, %v735
          %v960 = vpack.c.b16 %v744, %v736
          %v961 = vpack.c.b16 %v753, %v745
          %v962 = vpack.c.b16 %v754, %v746
          %v963 = vpack.c.b16 %v755, %v747
          %v964 = vpack.c.b16 %v756, %v748
          %v965 = vpack.c.b16 %v757, %v749
          %v966 = vpack.c.b16 %v758, %v750
          %v967 = vpack.c.b16 %v759, %v751
          %v968 = vpack.c.b16 %v760, %v752
          %v969 = vpack.c.b16 %v769, %v761
          %v970 = vpack.c.b16 %v770, %v762
          %v971 = vpack.c.b16 %v771, %v763
          %v972 = vpack.c.b16 %v772, %v764
          %v973 = vpack.c.b16 %v773, %v765
          %v974 = vpack.c.b16 %v774, %v766
          %v975 = vpack.c.b16 %v775, %v767
          %v976 = vpack.c.b16 %v776, %v768
          %v977 = vpack.c.b16 %v785, %v777
          %v978 = vpack.c.b16 %v786, %v778
          %v979 = vpack.c.b16 %v787, %v779
          %v980 = vpack.c.b16 %v788, %v780
          %v981 = vpack.c.b16 %v789, %v781
          %v982 = vpack.c.b16 %v790, %v782
          %v983 = vpack.c.b16 %v791, %v783
          %v984 = vpack.c.b16 %v792, %v784
          %v985 = vpack.c.b16 %v801, %v793
          %v986 = vpack.c.b16 %v802, %v794
          %v987 = vpack.c.b16 %v803, %v795
          %v988 = vpack.c.b16 %v804, %v796
          %v989 = vpack.c.b16 %v805, %v797
          %v990 = vpack.c.b16 %v806, %v798
          %v991 = vpack.c.b16 %v807, %v799
          %v992 = vpack.c.b16 %v808, %v800
          %v993 = vpack.c.b16 %v817, %v809
          %v994 = vpack.c.b16 %v818, %v810
          %v995 = vpack.c.b16 %v819, %v811
          %v996 = vpack.c.b16 %v820, %v812
          %v997 = vpack.c.b16 %v821, %v813
          %v998 = vpack.c.b16 %v822, %v814
          %v999 = vpack.c.b16 %v823, %v815
          %v1000 = vpack.c.b16 %v824, %v816
          %v1001 = vpack.c.b16 %v833, %v825
          %v1002 = vpack.c.b16 %v834, %v826
          %v1003 = vpack.c.b16 %v835, %v827
          %v1004 = vpack.c.b16 %v836, %v828
          %v1005 = vpack.c.b16 %v837, %v829
          %v1006 = vpack.c.b16 %v838, %v830
          %v1007 = vpack.c.b16 %v839, %v831
          %v1008 = vpack.c.b16 %v840, %v832
          %v1009 = vpack.c.b16 %v849, %v841
          %v1010 = vpack.c.b16 %v850, %v842
          %v1011 = vpack.c.b16 %v851, %v843
          %v1012 = vpack.c.b16 %v852, %v844
          %v1013 = vpack.c.b16 %v853, %v845
          %v1014 = vpack.c.b16 %v854, %v846
          %v1015 = vpack.c.b16 %v855, %v847
          %v1016 = vpack.c.b16 %v856, %v848
          %v1017 = vpack.c.b16 %v865, %v857
          %v1018 = vpack.c.b16 %v866, %v858
          %v1019 = vpack.c.b16 %v867, %v859
          %v1020 = vpack.c.b16 %v868, %v860
          %v1021 = vpack.c.b16 %v869, %v861
          %v1022 = vpack.c.b16 %v870, %v862
          %v1023 = vpack.c.b16 %v871, %v863
          %v1024 = vpack.c.b16 %v872, %v864
          %v1025 = vpack.c.b16 %v881, %v873
          %v1026 = vpack.c.b16 %v882, %v874
          %v1027 = vpack.c.b16 %v883, %v875
          %v1028 = vpack.c.b16 %v884, %v876
          %v1029 = vpack.c.b16 %v885, %v877
          %v1030 = vpack.c.b16 %v886, %v878
          %v1031 = vpack.c.b16 %v887, %v879
          %v1032 = vpack.c.b16 %v888, %v880
          %v1033 = vpack.c.b16 %v897, %v889
          %v1034 = vpack.c.b16 %v898, %v890
          %v1035 = vpack.c.b16 %v899, %v891
          %v1036 = vpack.c.b16 %v900, %v892
          %v1037 = vpack.c.b16 %v901, %v893
          %v1038 = vpack.c.b16 %v902, %v894
          %v1039 = vpack.c.b16 %v903, %v895
          %v1040 = vpack.c.b16 %v904, %v896
          %v1041 = vpack.c.b16 %v913, %v905
          %v1042 = vpack.c.b16 %v914, %v906
          %v1043 = vpack.c.b16 %v915, %v907
          %v1044 = vpack.c.b16 %v916, %v908
          %v1045 = vpack.c.b16 %v917, %v909
          %v1046 = vpack.c.b16 %v918, %v910
          %v1047 = vpack.c.b16 %v919, %v911
          %v1048 = vpack.c.b16 %v920, %v912
          %1177 = vmatprep.subr.bf16.mxu0 %v922
          %1178 = vmatpush1.bf16.msra.mxu0 %v921
          %1179 = vmatprep.subr.bf16.mxu0 %v930
          %1180 = vmatpush1.bf16.msra.mxu0 %v929
          %1181 = vmatprep.subr.bf16.mxu0 %v938
          %1182 = vmatpush1.bf16.msra.mxu0 %v937
          %1183 = vmatprep.subr.bf16.mxu0 %v946
          %1184 = vmatpush1.bf16.msra.mxu0 %v945
          %1185 = vmatprep.subr.bf16.mxu0 %v954
          %1186 = vmatpush1.bf16.msra.mxu0 %v953
          %1187 = vmatprep.subr.bf16.mxu0 %v962
          %1188 = vmatpush1.bf16.msra.mxu0 %v961
          %1189 = vmatprep.subr.bf16.mxu0 %v970
          %1190 = vmatpush1.bf16.msra.mxu0 %v969
          %1191 = vmatprep.subr.bf16.mxu0 %v978
          %1192 = vmatpush1.bf16.msra.mxu0 %v977
          %1193 = vmatprep.subr.bf16.mxu0 %v986
          %1194 = vmatpush1.bf16.msra.mxu0 %v985
          %1195 = vmatprep.subr.bf16.mxu0 %v994
          %1196 = vmatpush1.bf16.msra.mxu0 %v993
          %1197 = vmatprep.subr.bf16.mxu0 %v1002
          %1198 = vmatpush1.bf16.msra.mxu0 %v1001
          %1199 = vmatprep.subr.bf16.mxu0 %v1010
          %1200 = vmatpush1.bf16.msra.mxu0 %v1009
          %1201 = vmatprep.subr.bf16.mxu0 %v1018
          %1202 = vmatpush1.bf16.msra.mxu0 %v1017
          %1203 = vmatprep.subr.bf16.mxu0 %v1026
          %1204 = vmatpush1.bf16.msra.mxu0 %v1025
          %1205 = vmatprep.subr.bf16.mxu0 %v1034
          %1206 = vmatpush1.bf16.msra.mxu0 %v1033
          %1207 = vmatprep.subr.bf16.mxu0 %v1042
          %1208 = vmatpush1.bf16.msra.mxu0 %v1041
          %1209 = vmatprep.mubr.bf16.mxu0 %v408
          %1210 = vmatmul.mubr.bf16.gmra.mrb[0].mxu0 %v407
          %v1211 = vpop.f32.mrb[0].mxu0
          %v1212 = vadd.f32 0.0, %v1211
          %v1213 = vpop.f32.mrb[0].mxu0
          %v1214 = vadd.f32 0.0, %v1213
          %v1215 = vpop.f32.mrb[0].mxu0
          %v1216 = vpop.f32.mrb[0].mxu0
          %1217 = vdwg.mxu0
          %1218 = vmatprep.subr.bf16.mxu0 %v924
          %1219 = vmatpush1.bf16.msra.mxu0 %v923
          %1220 = vmatprep.subr.bf16.mxu0 %v932
          %1221 = vmatpush1.bf16.msra.mxu0 %v931
          %1222 = vmatprep.subr.bf16.mxu0 %v940
          %1223 = vmatpush1.bf16.msra.mxu0 %v939
          %1224 = vmatprep.subr.bf16.mxu0 %v948
          %1225 = vmatpush1.bf16.msra.mxu0 %v947
          %1226 = vmatprep.subr.bf16.mxu0 %v956
          %1227 = vmatpush1.bf16.msra.mxu0 %v955
          %1228 = vmatprep.subr.bf16.mxu0 %v964
          %1229 = vmatpush1.bf16.msra.mxu0 %v963
          %1230 = vmatprep.subr.bf16.mxu0 %v972
          %1231 = vmatpush1.bf16.msra.mxu0 %v971
          %1232 = vmatprep.subr.bf16.mxu0 %v980
          %1233 = vmatpush1.bf16.msra.mxu0 %v979
          %1234 = vmatprep.subr.bf16.mxu0 %v988
          %1235 = vmatpush1.bf16.msra.mxu0 %v987
          %1236 = vmatprep.subr.bf16.mxu0 %v996
          %1237 = vmatpush1.bf16.msra.mxu0 %v995
          %1238 = vmatprep.subr.bf16.mxu0 %v1004
          %1239 = vmatpush1.bf16.msra.mxu0 %v1003
          %1240 = vmatprep.subr.bf16.mxu0 %v1012
          %1241 = vmatpush1.bf16.msra.mxu0 %v1011
          %1242 = vmatprep.subr.bf16.mxu0 %v1020
          %1243 = vmatpush1.bf16.msra.mxu0 %v1019
          %1244 = vmatprep.subr.bf16.mxu0 %v1028
          %1245 = vmatpush1.bf16.msra.mxu0 %v1027
          %1246 = vmatprep.subr.bf16.mxu0 %v1036
          %1247 = vmatpush1.bf16.msra.mxu0 %v1035
          %1248 = vmatprep.subr.bf16.mxu0 %v1044
          %1249 = vmatpush1.bf16.msra.mxu0 %v1043
          %1250 = vmatprep.mubr.bf16.mxu0 %v408
          %1251 = vmatmul.mubr.bf16.gmra.mrb[0].mxu0 %v407
          %v1252 = vpop.f32.mrb[0].mxu0
          %v1253 = vadd.f32 0.0, %v1252
          %v1254 = vpop.f32.mrb[0].mxu0
          %v1255 = vadd.f32 0.0, %v1254
          %v1256 = vpop.f32.mrb[0].mxu0
          %v1257 = vpop.f32.mrb[0].mxu0
          %1258 = vdwg.mxu0
          %1259 = vmatprep.subr.bf16.mxu0 %v926
          %1260 = vmatpush1.bf16.msra.mxu0 %v925
          %1261 = vmatprep.subr.bf16.mxu0 %v934
          %1262 = vmatpush1.bf16.msra.mxu0 %v933
          %1263 = vmatprep.subr.bf16.mxu0 %v942
          %1264 = vmatpush1.bf16.msra.mxu0 %v941
          %1265 = vmatprep.subr.bf16.mxu0 %v950
          %1266 = vmatpush1.bf16.msra.mxu0 %v949
          %1267 = vmatprep.subr.bf16.mxu0 %v958
          %1268 = vmatpush1.bf16.msra.mxu0 %v957
          %1269 = vmatprep.subr.bf16.mxu0 %v966
          %1270 = vmatpush1.bf16.msra.mxu0 %v965
          %1271 = vmatprep.subr.bf16.mxu0 %v974
          %1272 = vmatpush1.bf16.msra.mxu0 %v973
          %1273 = vmatprep.subr.bf16.mxu0 %v982
          %1274 = vmatpush1.bf16.msra.mxu0 %v981
          %1275 = vmatprep.subr.bf16.mxu0 %v990
          %1276 = vmatpush1.bf16.msra.mxu0 %v989
          %1277 = vmatprep.subr.bf16.mxu0 %v998
          %1278 = vmatpush1.bf16.msra.mxu0 %v997
          %1279 = vmatprep.subr.bf16.mxu0 %v1006
          %1280 = vmatpush1.bf16.msra.mxu0 %v1005
          %1281 = vmatprep.subr.bf16.mxu0 %v1014
          %1282 = vmatpush1.bf16.msra.mxu0 %v1013
          %1283 = vmatprep.subr.bf16.mxu0 %v1022
          %1284 = vmatpush1.bf16.msra.mxu0 %v1021
          %1285 = vmatprep.subr.bf16.mxu0 %v1030
          %1286 = vmatpush1.bf16.msra.mxu0 %v1029
          %1287 = vmatprep.subr.bf16.mxu0 %v1038
          %1288 = vmatpush1.bf16.msra.mxu0 %v1037
          %1289 = vmatprep.subr.bf16.mxu0 %v1046
          %1290 = vmatpush1.bf16.msra.mxu0 %v1045
          %1291 = vmatprep.mubr.bf16.mxu0 %v408
          %1292 = vmatmul.mubr.bf16.gmra.mrb[0].mxu0 %v407
          %v1293 = vpop.f32.mrb[0].mxu0
          %v1294 = vadd.f32 0.0, %v1293
          %v1295 = vpop.f32.mrb[0].mxu0
          %v1296 = vadd.f32 0.0, %v1295
          %v1297 = vpop.f32.mrb[0].mxu0
          %v1298 = vpop.f32.mrb[0].mxu0
          %1299 = vdwg.mxu0
          %1300 = vmatprep.subr.bf16.mxu0 %v928
          %1301 = vmatpush1.bf16.msra.mxu0 %v927
          %1302 = vmatprep.subr.bf16.mxu0 %v936
          %1303 = vmatpush1.bf16.msra.mxu0 %v935
          %1304 = vmatprep.subr.bf16.mxu0 %v944
          %1305 = vmatpush1.bf16.msra.mxu0 %v943
          %1306 = vmatprep.subr.bf16.mxu0 %v952
          %1307 = vmatpush1.bf16.msra.mxu0 %v951
          %1308 = vmatprep.subr.bf16.mxu0 %v960
          %1309 = vmatpush1.bf16.msra.mxu0 %v959
          %1310 = vmatprep.subr.bf16.mxu0 %v968
          %1311 = vmatpush1.bf16.msra.mxu0 %v967
          %1312 = vmatprep.subr.bf16.mxu0 %v976
          %1313 = vmatpush1.bf16.msra.mxu0 %v975
          %1314 = vmatprep.subr.bf16.mxu0 %v984
          %1315 = vmatpush1.bf16.msra.mxu0 %v983
          %1316 = vmatprep.subr.bf16.mxu0 %v992
          %1317 = vmatpush1.bf16.msra.mxu0 %v991
          %1318 = vmatprep.subr.bf16.mxu0 %v1000
          %1319 = vmatpush1.bf16.msra.mxu0 %v999
          %1320 = vmatprep.subr.bf16.mxu0 %v1008
          %1321 = vmatpush1.bf16.msra.mxu0 %v1007
          %1322 = vmatprep.subr.bf16.mxu0 %v1016
          %1323 = vmatpush1.bf16.msra.mxu0 %v1015
          %1324 = vmatprep.subr.bf16.mxu0 %v1024
          %1325 = vmatpush1.bf16.msra.mxu0 %v1023
          %1326 = vmatprep.subr.bf16.mxu0 %v1032
          %1327 = vmatpush1.bf16.msra.mxu0 %v1031
          %1328 = vmatprep.subr.bf16.mxu0 %v1040
          %1329 = vmatpush1.bf16.msra.mxu0 %v1039
          %1330 = vmatprep.subr.bf16.mxu0 %v1048
          %1331 = vmatpush1.bf16.msra.mxu0 %v1047
          %1332 = vmatprep.mubr.bf16.mxu0 %v408
          %1333 = vmatmul.mubr.bf16.gmra.mrb[0].mxu0 %v407
          %v1334 = vpop.f32.mrb[0].mxu0
          %v1335 = vadd.f32 0.0, %v1334
          %v1336 = vpop.f32.mrb[0].mxu0
          %v1337 = vadd.f32 0.0, %v1336
          %v1338 = vpop.f32.mrb[0].mxu0
          %v1339 = vpop.f32.mrb[0].mxu0
          %1340 = vdwg.mxu0
          %1341 = vst [vmem:[#allocation2] sm:$0xff] 0.0
          %1342 = vst [vmem:[#allocation2 + $0x48] sm:$0xff] 0.0
          %1343 = vst [vmem:[#allocation2 + $0x8] sm:$0xff] %v1212
          %1344 = vst [vmem:[#allocation2 + $0x10] sm:$0xff] %v1214
          %1345 = vst [vmem:[#allocation2 + $0x18] sm:$0xff] %v1253
          %1346 = vst [vmem:[#allocation2 + $0x20] sm:$0xff] %v1255
          %1347 = vst [vmem:[#allocation2 + $0x28] sm:$0xff] %v1294
          %1348 = vst [vmem:[#allocation2 + $0x30] sm:$0xff] %v1296
          %1349 = vst [vmem:[#allocation2 + $0x38] sm:$0xff] %v1335
          %1350 = vst [vmem:[#allocation2 + $0x40] sm:$0xff] %v1337
          %v1351 = vlaneseq
          %v1352 = vand.u32 %v1351, 127
          %v1353 = vadd.s32 %v1352, 128
          %v1354 = vadd.s32 %v1352, 256
          %v1355 = vadd.s32 %v1352, 384
          %v1356 = vadd.s32 %v1352, 512
          %v1357 = vadd.s32 %v1352, 640
          %v1358 = vadd.s32 %v1352, 768
          %v1359 = vadd.s32 %v1352, 896
          %vm1360 = vcmp.lt.s32.totalorder %v1352, 0
          %v1361 = vsub.s32 0, %v1352
          %v1362 = vsel %vm1360, %v1361, %v1352
          %v1363 = vshrl.u32 %v1362, 5
          %v1364 = vand.u32 %v1362, 31
          %v1365 = vsub.s32 0, %v1364
          %v1366 = vsel %vm1360, %v1365, %v1364
          %vm1367 = vcmp.lt.s32.totalorder %v1353, 0
          %v1368 = vsub.s32 0, %v1353
          %v1369 = vsel %vm1367, %v1368, %v1353
          %v1370 = vshrl.u32 %v1369, 5
          %v1371 = vand.u32 %v1369, 31
          %v1372 = vsub.s32 0, %v1371
          %v1373 = vsel %vm1367, %v1372, %v1371
          %vm1374 = vcmp.lt.s32.totalorder %v1354, 0
          %v1375 = vsub.s32 0, %v1354
          %v1376 = vsel %vm1374, %v1375, %v1354
          %v1377 = vshrl.u32 %v1376, 5
          %v1378 = vand.u32 %v1376, 31
          %v1379 = vsub.s32 0, %v1378
          %v1380 = vsel %vm1374, %v1379, %v1378
          %vm1381 = vcmp.lt.s32.totalorder %v1355, 0
          %v1382 = vsub.s32 0, %v1355
          %v1383 = vsel %vm1381, %v1382, %v1355
          %v1384 = vshrl.u32 %v1383, 5
          %v1385 = vand.u32 %v1383, 31
          %v1386 = vsub.s32 0, %v1385
          %v1387 = vsel %vm1381, %v1386, %v1385
          %vm1388 = vcmp.lt.s32.totalorder %v1356, 0
          %v1389 = vsub.s32 0, %v1356
          %v1390 = vsel %vm1388, %v1389, %v1356
          %v1391 = vshrl.u32 %v1390, 5
          %v1392 = vand.u32 %v1390, 31
          %v1393 = vsub.s32 0, %v1392
          %v1394 = vsel %vm1388, %v1393, %v1392
          %vm1395 = vcmp.lt.s32.totalorder %v1357, 0
          %v1396 = vsub.s32 0, %v1357
          %v1397 = vsel %vm1395, %v1396, %v1357
          %v1398 = vshrl.u32 %v1397, 5
          %v1399 = vand.u32 %v1397, 31
          %v1400 = vsub.s32 0, %v1399
          %v1401 = vsel %vm1395, %v1400, %v1399
          %vm1402 = vcmp.lt.s32.totalorder %v1358, 0
          %v1403 = vsub.s32 0, %v1358
          %v1404 = vsel %vm1402, %v1403, %v1358
          %v1405 = vshrl.u32 %v1404, 5
          %v1406 = vand.u32 %v1404, 31
          %v1407 = vsub.s32 0, %v1406
          %v1408 = vsel %vm1402, %v1407, %v1406
          %vm1409 = vcmp.lt.s32.totalorder %v1359, 0
          %v1410 = vsub.s32 0, %v1359
          %v1411 = vsel %vm1409, %v1410, %v1359
          %v1412 = vshrl.u32 %v1411, 5
          %v1413 = vand.u32 %v1411, 31
          %v1414 = vsub.s32 0, %v1413
          %v1415 = vsel %vm1409, %v1414, %v1413
          %vm1416 = vcmp.ne.s32.totalorder %v1366, 0
          %vm1417 = vcmp.ne.s32.totalorder %v1373, 0
          %vm1418 = vcmp.ne.s32.totalorder %v1380, 0
          %vm1419 = vcmp.ne.s32.totalorder %v1387, 0
          %vm1420 = vcmp.ne.s32.totalorder %v1394, 0
          %vm1421 = vcmp.ne.s32.totalorder %v1401, 0
          %vm1422 = vcmp.ne.s32.totalorder %v1408, 0
          %vm1423 = vcmp.ne.s32.totalorder %v1415, 0
          %vm1424 = vcmp.lt.s32.totalorder %v1366, 0
          %vm1425 = vcmp.lt.s32.totalorder %v1373, 0
          %vm1426 = vcmp.lt.s32.totalorder %v1380, 0
          %vm1427 = vcmp.lt.s32.totalorder %v1387, 0
          %vm1428 = vcmp.lt.s32.totalorder %v1394, 0
          %vm1429 = vcmp.lt.s32.totalorder %v1401, 0
          %vm1430 = vcmp.lt.s32.totalorder %v1408, 0
          %vm1431 = vcmp.lt.s32.totalorder %v1415, 0
          %vm1432 = vmand %vm1424, %vm1416
          %vm1433 = vmand %vm1425, %vm1417
          %vm1434 = vmand %vm1426, %vm1418
          %vm1435 = vmand %vm1427, %vm1419
          %vm1436 = vmand %vm1428, %vm1420
          %vm1437 = vmand %vm1429, %vm1421
          %vm1438 = vmand %vm1430, %vm1422
          %vm1439 = vmand %vm1431, %vm1423
          %v1440 = vadd.s32 %v1366, 32
          %v1441 = vadd.s32 %v1373, 32
          %v1442 = vadd.s32 %v1380, 32
          %v1443 = vadd.s32 %v1387, 32
          %v1444 = vadd.s32 %v1394, 32
          %v1445 = vadd.s32 %v1401, 32
          %v1446 = vadd.s32 %v1408, 32
          %v1447 = vadd.s32 %v1415, 32
          %v1448 = vsel %vm1432, %v1440, %v1366
          %v1449 = vsel %vm1433, %v1441, %v1373
          %v1450 = vsel %vm1434, %v1442, %v1380
          %v1451 = vsel %vm1435, %v1443, %v1387
          %v1452 = vsel %vm1436, %v1444, %v1394
          %v1453 = vsel %vm1437, %v1445, %v1401
          %v1454 = vsel %vm1438, %v1446, %v1408
          %v1455 = vsel %vm1439, %v1447, %v1415
          %v1456 = vld [vmem:[#allocation2] sm:$0xff]
          %v1457 = vld [vmem:[#allocation2 + $0x8] sm:$0xff]
          %v1458 = vld [vmem:[#allocation2 + $0x10] sm:$0xff]
          %v1459 = vld [vmem:[#allocation2 + $0x18] sm:$0xff]
          %v1460 = vld [vmem:[#allocation2 + $0x20] sm:$0xff]
          %v1461 = vld [vmem:[#allocation2 + $0x28] sm:$0xff]
          %v1462 = vld [vmem:[#allocation2 + $0x30] sm:$0xff]
          %v1463 = vld [vmem:[#allocation2 + $0x38] sm:$0xff]
          %v1464 = vld [vmem:[#allocation2 + $0x40] sm:$0xff]
          %vm1465 = vcmp.ne.s32.totalorder %v1448, 0
          %vm1466 = vcmp.ne.s32.totalorder %v1449, 0
          %vm1467 = vcmp.ne.s32.totalorder %v1450, 0
          %vm1468 = vcmp.ne.s32.totalorder %v1451, 0
          %vm1469 = vcmp.ne.s32.totalorder %v1452, 0
          %vm1470 = vcmp.ne.s32.totalorder %v1453, 0
          %vm1471 = vcmp.ne.s32.totalorder %v1454, 0
          %vm1472 = vcmp.ne.s32.totalorder %v1455, 0
          %v1473 = vsel %vm1465, 1, 0
          %v1474 = vsel %vm1466, 1, 0
          %v1475 = vsel %vm1467, 1, 0
          %v1476 = vsel %vm1468, 1, 0
          %v1477 = vsel %vm1469, 1, 0
          %v1478 = vsel %vm1470, 1, 0
          %v1479 = vsel %vm1471, 1, 0
          %v1480 = vsel %vm1472, 1, 0
          %vm1481 = vcmp.eq.s32.totalorder %v1473, 1
          %vm1482 = vcmp.eq.s32.totalorder %v1474, 1
          %vm1483 = vcmp.eq.s32.totalorder %v1475, 1
          %vm1484 = vcmp.eq.s32.totalorder %v1476, 1
          %vm1485 = vcmp.eq.s32.totalorder %v1477, 1
          %vm1486 = vcmp.eq.s32.totalorder %v1478, 1
          %vm1487 = vcmp.eq.s32.totalorder %v1479, 1
          %vm1488 = vcmp.eq.s32.totalorder %v1480, 1
          %1498 = vrot.lane.b32.xlu0 %v1456, 33
          %v1499 = vpop.permute.xlu0 %1498
          %1500 = vrot.lane.b32.xlu0 %v1457, 33
          %v1501 = vpop.permute.xlu0 %1500
          %1502 = vrot.lane.b32.xlu0 %v1458, 33
          %v1503 = vpop.permute.xlu0 %1502
          %1504 = vrot.lane.b32.xlu0 %v1459, 33
          %v1505 = vpop.permute.xlu0 %1504
          %1506 = vrot.lane.b32.xlu0 %v1460, 33
          %v1507 = vpop.permute.xlu0 %1506
          %1508 = vrot.lane.b32.xlu0 %v1461, 33
          %v1509 = vpop.permute.xlu0 %1508
          %1510 = vrot.lane.b32.xlu0 %v1462, 33
          %v1511 = vpop.permute.xlu0 %1510
          %1512 = vrot.lane.b32.xlu0 %v1463, 33
          %v1513 = vpop.permute.xlu0 %1512
          %1514 = vrot.lane.b32.xlu0 %v1464, 33
          %v1515 = vpop.permute.xlu0 %1514
          %vm1516 = vcmask 269312
          %v1517 = vsel %vm1516, %v1499, %v1501
          %v1518 = vsel %vm1516, %v1501, %v1503
          %v1519 = vsel %vm1516, %v1503, %v1505
          %v1520 = vsel %vm1516, %v1505, %v1507
          %v1521 = vsel %vm1516, %v1507, %v1509
          %v1522 = vsel %vm1516, %v1509, %v1511
          %v1523 = vsel %vm1516, %v1511, %v1513
          %v1524 = vsel %vm1516, %v1513, %v1515
          %v1533 = vsel %vm1481, %v1517, 0.0
          %v1534 = vsel %vm1482, %v1518, 0.0
          %v1535 = vsel %vm1483, %v1519, 0.0
          %v1536 = vsel %vm1484, %v1520, 0.0
          %v1537 = vsel %vm1485, %v1521, 0.0
          %v1538 = vsel %vm1486, %v1522, 0.0
          %v1539 = vsel %vm1487, %v1523, 0.0
          %v1540 = vsel %vm1488, %v1524, 0.0
          %1541 = vst [vmem:[#allocation3] sm:$0xff] %v1533
          %1542 = vst [vmem:[#allocation3 + $0x8] sm:$0xff] %v1534
          %1543 = vst [vmem:[#allocation3 + $0x10] sm:$0xff] %v1535
          %1544 = vst [vmem:[#allocation3 + $0x18] sm:$0xff] %v1536
          %1545 = vst [vmem:[#allocation3 + $0x20] sm:$0xff] %v1537
          %1546 = vst [vmem:[#allocation3 + $0x28] sm:$0xff] %v1538
          %1547 = vst [vmem:[#allocation3 + $0x30] sm:$0xff] %v1539
          %1548 = vst [vmem:[#allocation3 + $0x38] sm:$0xff] %v1540
          %v1549 = vld [vmem:[#allocation2] sm:$0xff]
          %v1550 = vld [vmem:[#allocation2 + $0x8] sm:$0xff]
          %v1551 = vld [vmem:[#allocation2 + $0x10] sm:$0xff]
          %v1552 = vld [vmem:[#allocation2 + $0x18] sm:$0xff]
          %v1553 = vld [vmem:[#allocation2 + $0x20] sm:$0xff]
          %v1554 = vld [vmem:[#allocation2 + $0x28] sm:$0xff]
          %v1555 = vld [vmem:[#allocation2 + $0x30] sm:$0xff]
          %v1556 = vld [vmem:[#allocation2 + $0x38] sm:$0xff]
          %v1557 = vld [vmem:[#allocation2 + $0x40] sm:$0xff]
          %1567 = vrot.lane.b32.xlu0 %v1549, 32
          %v1568 = vpop.permute.xlu0 %1567
          %1569 = vrot.lane.b32.xlu0 %v1550, 32
          %v1570 = vpop.permute.xlu0 %1569
          %1571 = vrot.lane.b32.xlu0 %v1551, 32
          %v1572 = vpop.permute.xlu0 %1571
          %1573 = vrot.lane.b32.xlu0 %v1552, 32
          %v1574 = vpop.permute.xlu0 %1573
          %1575 = vrot.lane.b32.xlu0 %v1553, 32
          %v1576 = vpop.permute.xlu0 %1575
          %1577 = vrot.lane.b32.xlu0 %v1554, 32
          %v1578 = vpop.permute.xlu0 %1577
          %1579 = vrot.lane.b32.xlu0 %v1555, 32
          %v1580 = vpop.permute.xlu0 %1579
          %1581 = vrot.lane.b32.xlu0 %v1556, 32
          %v1582 = vpop.permute.xlu0 %1581
          %1583 = vrot.lane.b32.xlu0 %v1557, 32
          %v1584 = vpop.permute.xlu0 %1583
          %vm1585 = vcmask 261120
          %v1586 = vsel %vm1585, %v1568, %v1570
          %v1587 = vsel %vm1585, %v1570, %v1572
          %v1588 = vsel %vm1585, %v1572, %v1574
          %v1589 = vsel %vm1585, %v1574, %v1576
          %v1590 = vsel %vm1585, %v1576, %v1578
          %v1591 = vsel %vm1585, %v1578, %v1580
          %v1592 = vsel %vm1585, %v1580, %v1582
          %v1593 = vsel %vm1585, %v1582, %v1584
          %1602 = vst [vmem:[#allocation3 + $0x40] sm:$0xff] %v1586
          %1603 = vst [vmem:[#allocation3 + $0x48] sm:$0xff] %v1587
          %1604 = vst [vmem:[#allocation3 + $0x50] sm:$0xff] %v1588
          %1605 = vst [vmem:[#allocation3 + $0x58] sm:$0xff] %v1589
          %1606 = vst [vmem:[#allocation3 + $0x60] sm:$0xff] %v1590
          %1607 = vst [vmem:[#allocation3 + $0x68] sm:$0xff] %v1591
          %1608 = vst [vmem:[#allocation3 + $0x70] sm:$0xff] %v1592
          %1609 = vst [vmem:[#allocation3 + $0x78] sm:$0xff] %v1593
          %v1610 = vld [vmem:[#allocation2] sm:$0xff]
          %v1611 = vld [vmem:[#allocation2 + $0x8] sm:$0xff]
          %v1612 = vld [vmem:[#allocation2 + $0x10] sm:$0xff]
          %v1613 = vld [vmem:[#allocation2 + $0x18] sm:$0xff]
          %v1614 = vld [vmem:[#allocation2 + $0x20] sm:$0xff]
          %v1615 = vld [vmem:[#allocation2 + $0x28] sm:$0xff]
          %v1616 = vld [vmem:[#allocation2 + $0x30] sm:$0xff]
          %v1617 = vld [vmem:[#allocation2 + $0x38] sm:$0xff]
          %v1618 = vld [vmem:[#allocation2 + $0x40] sm:$0xff]
          %vm1619 = vcmp.ne.s32.totalorder %v1448, 31
          %vm1620 = vcmp.ne.s32.totalorder %v1449, 31
          %vm1621 = vcmp.ne.s32.totalorder %v1450, 31
          %vm1622 = vcmp.ne.s32.totalorder %v1451, 31
          %vm1623 = vcmp.ne.s32.totalorder %v1452, 31
          %vm1624 = vcmp.ne.s32.totalorder %v1453, 31
          %vm1625 = vcmp.ne.s32.totalorder %v1454, 31
          %vm1626 = vcmp.ne.s32.totalorder %v1455, 31
          %v1627 = vsel %vm1619, 1, 0
          %v1628 = vsel %vm1620, 1, 0
          %v1629 = vsel %vm1621, 1, 0
          %v1630 = vsel %vm1622, 1, 0
          %v1631 = vsel %vm1623, 1, 0
          %v1632 = vsel %vm1624, 1, 0
          %v1633 = vsel %vm1625, 1, 0
          %v1634 = vsel %vm1626, 1, 0
          %vm1635 = vcmp.eq.s32.totalorder %v1627, 1
          %vm1636 = vcmp.eq.s32.totalorder %v1628, 1
          %vm1637 = vcmp.eq.s32.totalorder %v1629, 1
          %vm1638 = vcmp.eq.s32.totalorder %v1630, 1
          %vm1639 = vcmp.eq.s32.totalorder %v1631, 1
          %vm1640 = vcmp.eq.s32.totalorder %v1632, 1
          %vm1641 = vcmp.eq.s32.totalorder %v1633, 1
          %vm1642 = vcmp.eq.s32.totalorder %v1634, 1
          %1652 = vrot.lane.b32.xlu0 %v1610, 31
          %v1653 = vpop.permute.xlu0 %1652
          %1654 = vrot.lane.b32.xlu0 %v1611, 31
          %v1655 = vpop.permute.xlu0 %1654
          %1656 = vrot.lane.b32.xlu0 %v1612, 31
          %v1657 = vpop.permute.xlu0 %1656
          %1658 = vrot.lane.b32.xlu0 %v1613, 31
          %v1659 = vpop.permute.xlu0 %1658
          %1660 = vrot.lane.b32.xlu0 %v1614, 31
          %v1661 = vpop.permute.xlu0 %1660
          %1662 = vrot.lane.b32.xlu0 %v1615, 31
          %v1663 = vpop.permute.xlu0 %1662
          %1664 = vrot.lane.b32.xlu0 %v1616, 31
          %v1665 = vpop.permute.xlu0 %1664
          %1666 = vrot.lane.b32.xlu0 %v1617, 31
          %v1667 = vpop.permute.xlu0 %1666
          %1668 = vrot.lane.b32.xlu0 %v1618, 31
          %v1669 = vpop.permute.xlu0 %1668
          %vm1670 = vcmask 252928
          %v1671 = vsel %vm1670, %v1653, %v1655
          %v1672 = vsel %vm1670, %v1655, %v1657
          %v1673 = vsel %vm1670, %v1657, %v1659
          %v1674 = vsel %vm1670, %v1659, %v1661
          %v1675 = vsel %vm1670, %v1661, %v1663
          %v1676 = vsel %vm1670, %v1663, %v1665
          %v1677 = vsel %vm1670, %v1665, %v1667
          %v1678 = vsel %vm1670, %v1667, %v1669
          %v1687 = vsel %vm1635, %v1671, 0.0
          %v1688 = vsel %vm1636, %v1672, 0.0
          %v1689 = vsel %vm1637, %v1673, 0.0
          %v1690 = vsel %vm1638, %v1674, 0.0
          %v1691 = vsel %vm1639, %v1675, 0.0
          %v1692 = vsel %vm1640, %v1676, 0.0
          %v1693 = vsel %vm1641, %v1677, 0.0
          %v1694 = vsel %vm1642, %v1678, 0.0
          %1695 = vst [vmem:[#allocation3 + $0x80] sm:$0xff] %v1687
          %1696 = vst [vmem:[#allocation3 + $0x88] sm:$0xff] %v1688
          %1697 = vst [vmem:[#allocation3 + $0x90] sm:$0xff] %v1689
          %1698 = vst [vmem:[#allocation3 + $0x98] sm:$0xff] %v1690
          %1699 = vst [vmem:[#allocation3 + $0xa0] sm:$0xff] %v1691
          %1700 = vst [vmem:[#allocation3 + $0xa8] sm:$0xff] %v1692
          %1701 = vst [vmem:[#allocation3 + $0xb0] sm:$0xff] %v1693
          %1702 = vst [vmem:[#allocation3 + $0xb8] sm:$0xff] %v1694
          %v1703 = vld [vmem:[#allocation2] sm:$0xff]
          %v1704 = vld [vmem:[#allocation2 + $0x8] sm:$0xff]
          %v1705 = vld [vmem:[#allocation2 + $0x10] sm:$0xff]
          %v1706 = vld [vmem:[#allocation2 + $0x18] sm:$0xff]
          %v1707 = vld [vmem:[#allocation2 + $0x20] sm:$0xff]
          %v1708 = vld [vmem:[#allocation2 + $0x28] sm:$0xff]
          %v1709 = vld [vmem:[#allocation2 + $0x30] sm:$0xff]
          %v1710 = vld [vmem:[#allocation2 + $0x38] sm:$0xff]
          %v1711 = vld [vmem:[#allocation2 + $0x40] sm:$0xff]
          %1721 = vrot.lane.b32.xlu0 %v1703, 1
          %v1722 = vpop.permute.xlu0 %1721
          %1723 = vrot.lane.b32.xlu0 %v1704, 1
          %v1724 = vpop.permute.xlu0 %1723
          %1725 = vrot.lane.b32.xlu0 %v1705, 1
          %v1726 = vpop.permute.xlu0 %1725
          %1727 = vrot.lane.b32.xlu0 %v1706, 1
          %v1728 = vpop.permute.xlu0 %1727
          %1729 = vrot.lane.b32.xlu0 %v1707, 1
          %v1730 = vpop.permute.xlu0 %1729
          %1731 = vrot.lane.b32.xlu0 %v1708, 1
          %v1732 = vpop.permute.xlu0 %1731
          %1733 = vrot.lane.b32.xlu0 %v1709, 1
          %v1734 = vpop.permute.xlu0 %1733
          %1735 = vrot.lane.b32.xlu0 %v1710, 1
          %v1736 = vpop.permute.xlu0 %1735
          %1737 = vrot.lane.b32.xlu0 %v1711, 1
          %v1738 = vpop.permute.xlu0 %1737
          %vm1739 = vcmask 7168
          %v1740 = vsel %vm1739, %v1722, %v1724
          %v1741 = vsel %vm1739, %v1724, %v1726
          %v1742 = vsel %vm1739, %v1726, %v1728
          %v1743 = vsel %vm1739, %v1728, %v1730
          %v1744 = vsel %vm1739, %v1730, %v1732
          %v1745 = vsel %vm1739, %v1732, %v1734
          %v1746 = vsel %vm1739, %v1734, %v1736
          %v1747 = vsel %vm1739, %v1736, %v1738
          %v1756 = vsel %vm1481, %v1740, 0.0
          %v1757 = vsel %vm1482, %v1741, 0.0
          %v1758 = vsel %vm1483, %v1742, 0.0
          %v1759 = vsel %vm1484, %v1743, 0.0
          %v1760 = vsel %vm1485, %v1744, 0.0
          %v1761 = vsel %vm1486, %v1745, 0.0
          %v1762 = vsel %vm1487, %v1746, 0.0
          %v1763 = vsel %vm1488, %v1747, 0.0
          %1764 = vst [vmem:[#allocation3 + $0xc0] sm:$0xff] %v1756
          %1765 = vst [vmem:[#allocation3 + $0xc8] sm:$0xff] %v1757
          %1766 = vst [vmem:[#allocation3 + $0xd0] sm:$0xff] %v1758
          %1767 = vst [vmem:[#allocation3 + $0xd8] sm:$0xff] %v1759
          %1768 = vst [vmem:[#allocation3 + $0xe0] sm:$0xff] %v1760
          %1769 = vst [vmem:[#allocation3 + $0xe8] sm:$0xff] %v1761
          %1770 = vst [vmem:[#allocation3 + $0xf0] sm:$0xff] %v1762
          %1771 = vst [vmem:[#allocation3 + $0xf8] sm:$0xff] %v1763
          %v1772 = vld [vmem:[#allocation2 + $0x8] sm:$0xff]
          %v1773 = vld [vmem:[#allocation2 + $0x10] sm:$0xff]
          %v1774 = vld [vmem:[#allocation2 + $0x18] sm:$0xff]
          %v1775 = vld [vmem:[#allocation2 + $0x20] sm:$0xff]
          %v1776 = vld [vmem:[#allocation2 + $0x28] sm:$0xff]
          %v1777 = vld [vmem:[#allocation2 + $0x30] sm:$0xff]
          %v1778 = vld [vmem:[#allocation2 + $0x38] sm:$0xff]
          %v1779 = vld [vmem:[#allocation2 + $0x40] sm:$0xff]
          %1780 = vst [vmem:[#allocation3 + $0x100] sm:$0xff] %v1772
          %1781 = vst [vmem:[#allocation3 + $0x108] sm:$0xff] %v1773
          %1782 = vst [vmem:[#allocation3 + $0x110] sm:$0xff] %v1774
          %1783 = vst [vmem:[#allocation3 + $0x118] sm:$0xff] %v1775
          %1784 = vst [vmem:[#allocation3 + $0x120] sm:$0xff] %v1776
          %1785 = vst [vmem:[#allocation3 + $0x128] sm:$0xff] %v1777
          %1786 = vst [vmem:[#allocation3 + $0x130] sm:$0xff] %v1778
          %1787 = vst [vmem:[#allocation3 + $0x138] sm:$0xff] %v1779
          %v1788 = vld [vmem:[#allocation2 + $0x8] sm:$0xff]
          %v1789 = vld [vmem:[#allocation2 + $0x10] sm:$0xff]
          %v1790 = vld [vmem:[#allocation2 + $0x18] sm:$0xff]
          %v1791 = vld [vmem:[#allocation2 + $0x20] sm:$0xff]
          %v1792 = vld [vmem:[#allocation2 + $0x28] sm:$0xff]
          %v1793 = vld [vmem:[#allocation2 + $0x30] sm:$0xff]
          %v1794 = vld [vmem:[#allocation2 + $0x38] sm:$0xff]
          %v1795 = vld [vmem:[#allocation2 + $0x40] sm:$0xff]
          %v1796 = vld [vmem:[#allocation2 + $0x48] sm:$0xff]
          %1806 = vrot.lane.b32.xlu0 %v1788, 127
          %v1807 = vpop.permute.xlu0 %1806
          %1808 = vrot.lane.b32.xlu0 %v1789, 127
          %v1809 = vpop.permute.xlu0 %1808
          %1810 = vrot.lane.b32.xlu0 %v1790, 127
          %v1811 = vpop.permute.xlu0 %1810
          %1812 = vrot.lane.b32.xlu0 %v1791, 127
          %v1813 = vpop.permute.xlu0 %1812
          %1814 = vrot.lane.b32.xlu0 %v1792, 127
          %v1815 = vpop.permute.xlu0 %1814
          %1816 = vrot.lane.b32.xlu0 %v1793, 127
          %v1817 = vpop.permute.xlu0 %1816
          %1818 = vrot.lane.b32.xlu0 %v1794, 127
          %v1819 = vpop.permute.xlu0 %1818
          %1820 = vrot.lane.b32.xlu0 %v1795, 127
          %v1821 = vpop.permute.xlu0 %1820
          %1822 = vrot.lane.b32.xlu0 %v1796, 127
          %v1823 = vpop.permute.xlu0 %1822
          %vm1824 = vcmask 1039360
          %v1825 = vsel %vm1824, %v1807, %v1809
          %v1826 = vsel %vm1824, %v1809, %v1811
          %v1827 = vsel %vm1824, %v1811, %v1813
          %v1828 = vsel %vm1824, %v1813, %v1815
          %v1829 = vsel %vm1824, %v1815, %v1817
          %v1830 = vsel %vm1824, %v1817, %v1819
          %v1831 = vsel %vm1824, %v1819, %v1821
          %v1832 = vsel %vm1824, %v1821, %v1823
          %v1841 = vsel %vm1635, %v1825, 0.0
          %v1842 = vsel %vm1636, %v1826, 0.0
          %v1843 = vsel %vm1637, %v1827, 0.0
          %v1844 = vsel %vm1638, %v1828, 0.0
          %v1845 = vsel %vm1639, %v1829, 0.0
          %v1846 = vsel %vm1640, %v1830, 0.0
          %v1847 = vsel %vm1641, %v1831, 0.0
          %v1848 = vsel %vm1642, %v1832, 0.0
          %1849 = vst [vmem:[#allocation3 + $0x140] sm:$0xff] %v1841
          %1850 = vst [vmem:[#allocation3 + $0x148] sm:$0xff] %v1842
          %1851 = vst [vmem:[#allocation3 + $0x150] sm:$0xff] %v1843
          %1852 = vst [vmem:[#allocation3 + $0x158] sm:$0xff] %v1844
          %1853 = vst [vmem:[#allocation3 + $0x160] sm:$0xff] %v1845
          %1854 = vst [vmem:[#allocation3 + $0x168] sm:$0xff] %v1846
          %1855 = vst [vmem:[#allocation3 + $0x170] sm:$0xff] %v1847
          %1856 = vst [vmem:[#allocation3 + $0x178] sm:$0xff] %v1848
          %v1857 = vld [vmem:[#allocation2 + $0x8] sm:$0xff]
          %v1858 = vld [vmem:[#allocation2 + $0x10] sm:$0xff]
          %v1859 = vld [vmem:[#allocation2 + $0x18] sm:$0xff]
          %v1860 = vld [vmem:[#allocation2 + $0x20] sm:$0xff]
          %v1861 = vld [vmem:[#allocation2 + $0x28] sm:$0xff]
          %v1862 = vld [vmem:[#allocation2 + $0x30] sm:$0xff]
          %v1863 = vld [vmem:[#allocation2 + $0x38] sm:$0xff]
          %v1864 = vld [vmem:[#allocation2 + $0x40] sm:$0xff]
          %v1865 = vld [vmem:[#allocation2 + $0x48] sm:$0xff]
          %1875 = vrot.lane.b32.xlu0 %v1857, 97
          %v1876 = vpop.permute.xlu0 %1875
          %1877 = vrot.lane.b32.xlu0 %v1858, 97
          %v1878 = vpop.permute.xlu0 %1877
          %1879 = vrot.lane.b32.xlu0 %v1859, 97
          %v1880 = vpop.permute.xlu0 %1879
          %1881 = vrot.lane.b32.xlu0 %v1860, 97
          %v1882 = vpop.permute.xlu0 %1881
          %1883 = vrot.lane.b32.xlu0 %v1861, 97
          %v1884 = vpop.permute.xlu0 %1883
          %1885 = vrot.lane.b32.xlu0 %v1862, 97
          %v1886 = vpop.permute.xlu0 %1885
          %1887 = vrot.lane.b32.xlu0 %v1863, 97
          %v1888 = vpop.permute.xlu0 %1887
          %1889 = vrot.lane.b32.xlu0 %v1864, 97
          %v1890 = vpop.permute.xlu0 %1889
          %1891 = vrot.lane.b32.xlu0 %v1865, 97
          %v1892 = vpop.permute.xlu0 %1891
          %vm1893 = vcmask 793600
          %v1894 = vsel %vm1893, %v1876, %v1878
          %v1895 = vsel %vm1893, %v1878, %v1880
          %v1896 = vsel %vm1893, %v1880, %v1882
          %v1897 = vsel %vm1893, %v1882, %v1884
          %v1898 = vsel %vm1893, %v1884, %v1886
          %v1899 = vsel %vm1893, %v1886, %v1888
          %v1900 = vsel %vm1893, %v1888, %v1890
          %v1901 = vsel %vm1893, %v1890, %v1892
          %v1910 = vsel %vm1481, %v1894, 0.0
          %v1911 = vsel %vm1482, %v1895, 0.0
          %v1912 = vsel %vm1483, %v1896, 0.0
          %v1913 = vsel %vm1484, %v1897, 0.0
          %v1914 = vsel %vm1485, %v1898, 0.0
          %v1915 = vsel %vm1486, %v1899, 0.0
          %v1916 = vsel %vm1487, %v1900, 0.0
          %v1917 = vsel %vm1488, %v1901, 0.0
          %1918 = vst [vmem:[#allocation3 + $0x180] sm:$0xff] %v1910
          %1919 = vst [vmem:[#allocation3 + $0x188] sm:$0xff] %v1911
          %1920 = vst [vmem:[#allocation3 + $0x190] sm:$0xff] %v1912
          %1921 = vst [vmem:[#allocation3 + $0x198] sm:$0xff] %v1913
          %1922 = vst [vmem:[#allocation3 + $0x1a0] sm:$0xff] %v1914
          %1923 = vst [vmem:[#allocation3 + $0x1a8] sm:$0xff] %v1915
          %1924 = vst [vmem:[#allocation3 + $0x1b0] sm:$0xff] %v1916
          %1925 = vst [vmem:[#allocation3 + $0x1b8] sm:$0xff] %v1917
          %v1926 = vld [vmem:[#allocation2 + $0x8] sm:$0xff]
          %v1927 = vld [vmem:[#allocation2 + $0x10] sm:$0xff]
          %v1928 = vld [vmem:[#allocation2 + $0x18] sm:$0xff]
          %v1929 = vld [vmem:[#allocation2 + $0x20] sm:$0xff]
          %v1930 = vld [vmem:[#allocation2 + $0x28] sm:$0xff]
          %v1931 = vld [vmem:[#allocation2 + $0x30] sm:$0xff]
          %v1932 = vld [vmem:[#allocation2 + $0x38] sm:$0xff]
          %v1933 = vld [vmem:[#allocation2 + $0x40] sm:$0xff]
          %v1934 = vld [vmem:[#allocation2 + $0x48] sm:$0xff]
          %1944 = vrot.lane.b32.xlu0 %v1926, 96
          %v1945 = vpop.permute.xlu0 %1944
          %1946 = vrot.lane.b32.xlu0 %v1927, 96
          %v1947 = vpop.permute.xlu0 %1946
          %1948 = vrot.lane.b32.xlu0 %v1928, 96
          %v1949 = vpop.permute.xlu0 %1948
          %1950 = vrot.lane.b32.xlu0 %v1929, 96
          %v1951 = vpop.permute.xlu0 %1950
          %1952 = vrot.lane.b32.xlu0 %v1930, 96
          %v1953 = vpop.permute.xlu0 %1952
          %1954 = vrot.lane.b32.xlu0 %v1931, 96
          %v1955 = vpop.permute.xlu0 %1954
          %1956 = vrot.lane.b32.xlu0 %v1932, 96
          %v1957 = vpop.permute.xlu0 %1956
          %1958 = vrot.lane.b32.xlu0 %v1933, 96
          %v1959 = vpop.permute.xlu0 %1958
          %1960 = vrot.lane.b32.xlu0 %v1934, 96
          %v1961 = vpop.permute.xlu0 %1960
          %vm1962 = vcmask 785408
          %v1963 = vsel %vm1962, %v1945, %v1947
          %v1964 = vsel %vm1962, %v1947, %v1949
          %v1965 = vsel %vm1962, %v1949, %v1951
          %v1966 = vsel %vm1962, %v1951, %v1953
          %v1967 = vsel %vm1962, %v1953, %v1955
          %v1968 = vsel %vm1962, %v1955, %v1957
          %v1969 = vsel %vm1962, %v1957, %v1959
          %v1970 = vsel %vm1962, %v1959, %v1961
          %1979 = vst [vmem:[#allocation3 + $0x1c0] sm:$0xff] %v1963
          %1980 = vst [vmem:[#allocation3 + $0x1c8] sm:$0xff] %v1964
          %1981 = vst [vmem:[#allocation3 + $0x1d0] sm:$0xff] %v1965
          %1982 = vst [vmem:[#allocation3 + $0x1d8] sm:$0xff] %v1966
          %1983 = vst [vmem:[#allocation3 + $0x1e0] sm:$0xff] %v1967
          %1984 = vst [vmem:[#allocation3 + $0x1e8] sm:$0xff] %v1968
          %1985 = vst [vmem:[#allocation3 + $0x1f0] sm:$0xff] %v1969
          %1986 = vst [vmem:[#allocation3 + $0x1f8] sm:$0xff] %v1970
          %v1987 = vld [vmem:[#allocation2 + $0x8] sm:$0xff]
          %v1988 = vld [vmem:[#allocation2 + $0x10] sm:$0xff]
          %v1989 = vld [vmem:[#allocation2 + $0x18] sm:$0xff]
          %v1990 = vld [vmem:[#allocation2 + $0x20] sm:$0xff]
          %v1991 = vld [vmem:[#allocation2 + $0x28] sm:$0xff]
          %v1992 = vld [vmem:[#allocation2 + $0x30] sm:$0xff]
          %v1993 = vld [vmem:[#allocation2 + $0x38] sm:$0xff]
          %v1994 = vld [vmem:[#allocation2 + $0x40] sm:$0xff]
          %v1995 = vld [vmem:[#allocation2 + $0x48] sm:$0xff]
          %2005 = vrot.lane.b32.xlu0 %v1987, 95
          %v2006 = vpop.permute.xlu0 %2005
          %2007 = vrot.lane.b32.xlu0 %v1988, 95
          %v2008 = vpop.permute.xlu0 %2007
          %2009 = vrot.lane.b32.xlu0 %v1989, 95
          %v2010 = vpop.permute.xlu0 %2009
          %2011 = vrot.lane.b32.xlu0 %v1990, 95
          %v2012 = vpop.permute.xlu0 %2011
          %2013 = vrot.lane.b32.xlu0 %v1991, 95
          %v2014 = vpop.permute.xlu0 %2013
          %2015 = vrot.lane.b32.xlu0 %v1992, 95
          %v2016 = vpop.permute.xlu0 %2015
          %2017 = vrot.lane.b32.xlu0 %v1993, 95
          %v2018 = vpop.permute.xlu0 %2017
          %2019 = vrot.lane.b32.xlu0 %v1994, 95
          %v2020 = vpop.permute.xlu0 %2019
          %2021 = vrot.lane.b32.xlu0 %v1995, 95
          %v2022 = vpop.permute.xlu0 %2021
          %vm2023 = vcmask 777216
          %v2024 = vsel %vm2023, %v2006, %v2008
          %v2025 = vsel %vm2023, %v2008, %v2010
          %v2026 = vsel %vm2023, %v2010, %v2012
          %v2027 = vsel %vm2023, %v2012, %v2014
          %v2028 = vsel %vm2023, %v2014, %v2016
          %v2029 = vsel %vm2023, %v2016, %v2018
          %v2030 = vsel %vm2023, %v2018, %v2020
          %v2031 = vsel %vm2023, %v2020, %v2022
          %v2040 = vsel %vm1635, %v2024, 0.0
          %v2041 = vsel %vm1636, %v2025, 0.0
          %v2042 = vsel %vm1637, %v2026, 0.0
          %v2043 = vsel %vm1638, %v2027, 0.0
          %v2044 = vsel %vm1639, %v2028, 0.0
          %v2045 = vsel %vm1640, %v2029, 0.0
          %v2046 = vsel %vm1641, %v2030, 0.0
          %v2047 = vsel %vm1642, %v2031, 0.0
          %2048 = vst [vmem:[#allocation3 + $0x200] sm:$0xff] %v2040
          %2049 = vst [vmem:[#allocation3 + $0x208] sm:$0xff] %v2041
          %2050 = vst [vmem:[#allocation3 + $0x210] sm:$0xff] %v2042
          %2051 = vst [vmem:[#allocation3 + $0x218] sm:$0xff] %v2043
          %2052 = vst [vmem:[#allocation3 + $0x220] sm:$0xff] %v2044
          %2053 = vst [vmem:[#allocation3 + $0x228] sm:$0xff] %v2045
          %2054 = vst [vmem:[#allocation3 + $0x230] sm:$0xff] %v2046
          %2055 = vst [vmem:[#allocation3 + $0x238] sm:$0xff] %v2047
        $region60: #{tpu_custom_call.1} parent=51 // pred_fallthru
          _
        %s2056 = smul.u32 %s28, 512
        %s2057 = sshra.s32 %s2056, 7
        %s2058 = sand.u32 %s2056, 127
        %s2059 = smul.addr %s2057, 8
        %s2060 = scalar_lea.vmem [#allocation3], %s2059
        %v2061 = vld [vmem:[%s2060] sm:$0xff]
        %v2062 = vld [vmem:[%s2060 + $0x8] sm:$0xff]
        %v2063 = vld [vmem:[%s2060 + $0x10] sm:$0xff]
        %v2064 = vld [vmem:[%s2060 + $0x18] sm:$0xff]
        %v2065 = vld [vmem:[%s2060 + $0x40] sm:$0xff]
        %v2066 = vld [vmem:[%s2060 + $0x48] sm:$0xff]
        %v2067 = vld [vmem:[%s2060 + $0x50] sm:$0xff]
        %v2068 = vld [vmem:[%s2060 + $0x58] sm:$0xff]
        %v2069 = vld [vmem:[%s2060 + $0x80] sm:$0xff]
        %v2070 = vld [vmem:[%s2060 + $0x88] sm:$0xff]
        %v2071 = vld [vmem:[%s2060 + $0x90] sm:$0xff]
        %v2072 = vld [vmem:[%s2060 + $0x98] sm:$0xff]
        %v2073 = vld [vmem:[%s2060 + $0xc0] sm:$0xff]
        %v2074 = vld [vmem:[%s2060 + $0xc8] sm:$0xff]
        %v2075 = vld [vmem:[%s2060 + $0xd0] sm:$0xff]
        %v2076 = vld [vmem:[%s2060 + $0xd8] sm:$0xff]
        %v2077 = vld [vmem:[%s2060 + $0x100] sm:$0xff]
        %v2078 = vld [vmem:[%s2060 + $0x108] sm:$0xff]
        %v2079 = vld [vmem:[%s2060 + $0x110] sm:$0xff]
        %v2080 = vld [vmem:[%s2060 + $0x118] sm:$0xff]
        %v2081 = vld [vmem:[%s2060 + $0x140] sm:$0xff]
        %v2082 = vld [vmem:[%s2060 + $0x148] sm:$0xff]
        %v2083 = vld [vmem:[%s2060 + $0x150] sm:$0xff]
        %v2084 = vld [vmem:[%s2060 + $0x158] sm:$0xff]
        %v2085 = vld [vmem:[%s2060 + $0x180] sm:$0xff]
        %v2086 = vld [vmem:[%s2060 + $0x188] sm:$0xff]
        %v2087 = vld [vmem:[%s2060 + $0x190] sm:$0xff]
        %v2088 = vld [vmem:[%s2060 + $0x198] sm:$0xff]
        %v2089 = vld [vmem:[%s2060 + $0x1c0] sm:$0xff]
        %v2090 = vld [vmem:[%s2060 + $0x1c8] sm:$0xff]
        %v2091 = vld [vmem:[%s2060 + $0x1d0] sm:$0xff]
        %v2092 = vld [vmem:[%s2060 + $0x1d8] sm:$0xff]
        %v2093 = vld [vmem:[%s2060 + $0x200] sm:$0xff]
        %v2094 = vld [vmem:[%s2060 + $0x208] sm:$0xff]
        %v2095 = vld [vmem:[%s2060 + $0x210] sm:$0xff]
        %v2096 = vld [vmem:[%s2060 + $0x218] sm:$0xff]
        %v2097 = vpack.c.bf16 %v2065, %v2061
        %v2098 = vpack.c.bf16 %v2066, %v2062
        %v2099 = vpack.c.bf16 %v2067, %v2063
        %v2100 = vpack.c.bf16 %v2068, %v2064
        %v2101 = vpack.c.bf16 %v2073, %v2069
        %v2102 = vpack.c.bf16 %v2074, %v2070
        %v2103 = vpack.c.bf16 %v2075, %v2071
        %v2104 = vpack.c.bf16 %v2076, %v2072
        %v2105 = vpack.c.bf16 %v2081, %v2077
        %v2106 = vpack.c.bf16 %v2082, %v2078
        %v2107 = vpack.c.bf16 %v2083, %v2079
        %v2108 = vpack.c.bf16 %v2084, %v2080
        %v2109 = vpack.c.bf16 %v2089, %v2085
        %v2110 = vpack.c.bf16 %v2090, %v2086
        %v2111 = vpack.c.bf16 %v2091, %v2087
        %v2112 = vpack.c.bf16 %v2092, %v2088
        %v2113 = vpack.c.bf16 %v2093, %v2093
        %v2114 = vpack.c.bf16 %v2094, %v2094
        %v2115 = vpack.c.bf16 %v2095, %v2095
        %v2116 = vpack.c.bf16 %v2096, %v2096
        %v2117 = vld [vmem:[%s6] sm:$0xf]
        %v2118 = vld [vmem:[%s7] sm:$0xff]
        %2120 = vset.pattern.permute.xlu0 0
        %2121 = vperm.xlu0 %2120, %v2118
        %v2122 = vpop.permute.xlu0 %2121
        %vm2124 = vcmask 588800
        %v2126 = vsel %vm2124, %v2117, 0
        %vm2128 = vcmask 1043456
        %v2130 = vsel %vm2128, %v2113, 0
        %v2133 = vsel %vm2128, %v2114, 0
        %v2136 = vsel %vm2128, %v2115, 0
        %v2139 = vsel %vm2128, %v2116, 0
        %2141 = vmatprep.subr.bf16.mxu0 %v2098
        %2142 = vmatpush1.bf16.msra.mxu0 %v2097
        %2143 = vmatprep.subr.bf16.mxu0 %v2102
        %2144 = vmatpush1.bf16.msra.mxu0 %v2101
        %2145 = vmatprep.subr.bf16.mxu0 %v2106
        %2146 = vmatpush1.bf16.msra.mxu0 %v2105
        %2147 = vmatprep.subr.bf16.mxu0 %v2110
        %2148 = vmatpush1.bf16.msra.mxu0 %v2109
        %2149 = vmatprep.subr.bf16.mxu0 %v2133
        %2150 = vmatpush1.bf16.msra.mxu0 %v2130
        %2151 = vmatprep.subr.bf16.mxu0 0
        %2152 = vmatpush1.bf16.msra.mxu0 0
        %2153 = vmatprep.subr.bf16.mxu0 0
        %2154 = vmatpush1.bf16.msra.mxu0 0
        %2155 = vmatprep.subr.bf16.mxu0 0
        %2156 = vmatpush1.bf16.msra.mxu0 0
        %2157 = vmatprep.subr.bf16.mxu0 0
        %2158 = vmatpush1.bf16.msra.mxu0 0
        %2159 = vmatprep.subr.bf16.mxu0 0
        %2160 = vmatpush1.bf16.msra.mxu0 0
        %2161 = vmatprep.subr.bf16.mxu0 0
        %2162 = vmatpush1.bf16.msra.mxu0 0
        %2163 = vmatprep.subr.bf16.mxu0 0
        %2164 = vmatpush1.bf16.msra.mxu0 0
        %2165 = vmatprep.subr.bf16.mxu0 0
        %2166 = vmatpush1.bf16.msra.mxu0 0
        %2167 = vmatprep.subr.bf16.mxu0 0
        %2168 = vmatpush1.bf16.msra.mxu0 0
        %2169 = vmatprep.subr.bf16.mxu0 0
        %2170 = vmatpush1.bf16.msra.mxu0 0
        %2171 = vmatprep.subr.bf16.mxu0 0
        %2172 = vmatpush1.bf16.msra.mxu0 0
        %2173 = vmatprep.mubr.bf16.mxu0 0
        %2174 = vmatmul.mubr.bf16.gmra.mrb[0].mxu0 %v2126
        %v2175 = vpop.f32.mrb[0].mxu0
        %v2176 = vadd.f32 %v2122, %v2175
        %v2177 = vpop.f32.mrb[0].mxu0
        %v2178 = vadd.f32 %v2122, %v2177
        %v2179 = vpop.f32.mrb[0].mxu0
        %v2180 = vpop.f32.mrb[0].mxu0
        %2181 = vdwg.mxu0
        %2182 = vmatprep.subr.bf16.mxu0 %v2100
        %2183 = vmatpush1.bf16.msra.mxu0 %v2099
        %2184 = vmatprep.subr.bf16.mxu0 %v2104
        %2185 = vmatpush1.bf16.msra.mxu0 %v2103
        %2186 = vmatprep.subr.bf16.mxu0 %v2108
        %2187 = vmatpush1.bf16.msra.mxu0 %v2107
        %2188 = vmatprep.subr.bf16.mxu0 %v2112
        %2189 = vmatpush1.bf16.msra.mxu0 %v2111
        %2190 = vmatprep.subr.bf16.mxu0 %v2139
        %2191 = vmatpush1.bf16.msra.mxu0 %v2136
        %2192 = vmatprep.subr.bf16.mxu0 0
        %2193 = vmatpush1.bf16.msra.mxu0 0
        %2194 = vmatprep.subr.bf16.mxu0 0
        %2195 = vmatpush1.bf16.msra.mxu0 0
        %2196 = vmatprep.subr.bf16.mxu0 0
        %2197 = vmatpush1.bf16.msra.mxu0 0
        %2198 = vmatprep.subr.bf16.mxu0 0
        %2199 = vmatpush1.bf16.msra.mxu0 0
        %2200 = vmatprep.subr.bf16.mxu0 0
        %2201 = vmatpush1.bf16.msra.mxu0 0
        %2202 = vmatprep.subr.bf16.mxu0 0
        %2203 = vmatpush1.bf16.msra.mxu0 0
        %2204 = vmatprep.subr.bf16.mxu0 0
        %2205 = vmatpush1.bf16.msra.mxu0 0
        %2206 = vmatprep.subr.bf16.mxu0 0
        %2207 = vmatpush1.bf16.msra.mxu0 0
        %2208 = vmatprep.subr.bf16.mxu0 0
        %2209 = vmatpush1.bf16.msra.mxu0 0
        %2210 = vmatprep.subr.bf16.mxu0 0
        %2211 = vmatpush1.bf16.msra.mxu0 0
        %2212 = vmatprep.subr.bf16.mxu0 0
        %2213 = vmatpush1.bf16.msra.mxu0 0
        %2214 = vmatprep.mubr.bf16.mxu0 0
        %2215 = vmatmul.mubr.bf16.gmra.mrb[0].mxu0 %v2126
        %v2216 = vpop.f32.mrb[0].mxu0
        %v2217 = vadd.f32 %v2122, %v2216
        %v2218 = vpop.f32.mrb[0].mxu0
        %v2219 = vadd.f32 %v2122, %v2218
        %v2220 = vpop.f32.mrb[0].mxu0
        %v2221 = vpop.f32.mrb[0].mxu0
        %2222 = vdwg.mxu0
        %2223 = vst [vmem:[%s327] sm:$0xff] %v2176
        %2224 = vst [vmem:[%s327 + $0x8] sm:$0xff] %v2178
        %2225 = vst [vmem:[%s327 + $0x10] sm:$0xff] %v2217
        %2226 = vst [vmem:[%s327 + $0x18] sm:$0xff] %v2219
        %s2227 = sand.u32 %s218, 1
        %s2228 = scalar_lea.sflag [#allocation6], %s2227
        %s2229 = sand.u32 %s218, 1
        %s2230 = smul.addr %s2229, 32
        %s2231 = scalar_lea.vmem [#allocation7], %s2230
        // Predicated region
        $region61: #{tpu_custom_call.1} parent=51 // pred_check
          %p2232 = pneg %p228
        $region62: #{tpu_custom_call.1} parent=51 // pred_check_branch
          %2234 = sbr.rel (%p2232) target = $region64
        $region63: #{tpu_custom_call.1} parent=51 // pred_region
          %s2235 = smul.u32 4, %s28
          %s2237 = ssub.s32 512, 512
          %2238 = vsyncadd %s2228, %s2237
          %s2239 = smul.addr %s27, 8
          %s2240 = sadd.s32 %s2235, %s2239
          %s2241 = smul.addr %s2240, 128
          %s2242 = scalar_lea.hbm %s8, %s2241
          %s2244 = sshll.u32 %s2231, 4
          %s2245 = int_to_ptr.vmem [resolvable:$true] %s2244
          %2247 = dma.vmem_to_hbm [thread:$0]  %s2245, 512, %s2242, %s2228
        $region64: #{tpu_custom_call.1} parent=51 // pred_fallthru
          _
      $region52: #{tpu_custom_call.1} parent=5 // pred_fallthru
        _
      %p2248 = scmp.le.s32.totalorder 2, %s18
      // Predicated region
      $region65: #{tpu_custom_call.1} parent=5 // pred_check
        %p2249 = pneg %p2248
      $region66: #{tpu_custom_call.1} parent=5 // pred_check_branch
        %2251 = sbr.rel (%p2249) target = $region68
      $region67: #{tpu_custom_call.1} parent=5 // pred_region
        %s2252 = ssub.s32 %s18, 2
        // Predicated region
        $region69: #{tpu_custom_call.1} parent=67 // pred_check
          %p2253 = pneg %p234
        $region70: #{tpu_custom_call.1} parent=67 // pred_check_branch
          %2255 = sbr.rel (%p2253) target = $region72
        $region71: #{tpu_custom_call.1} parent=67 // pred_region
          %s2256 = sand.u32 %s219, 1
          %s2257 = scalar_lea.sflag [#allocation6], %s2256
          %s2258 = sand.u32 %s219, 1
          %s2259 = smul.addr %s2258, 32
          %s2260 = scalar_lea.vmem [#allocation7], %s2259
          %2261 = dma.done %s2257, 512
        $region72: #{tpu_custom_call.1} parent=67 // pred_fallthru
          _
      $region68: #{tpu_custom_call.1} parent=5 // pred_fallthru
        _
    $region6: #{tpu_custom_call.1} parent=1 // loop_footer
      %s22 = sadd.s32 1, %s18
    $region7: #{tpu_custom_call.1} parent=1 // loop_footer_branch
      %17 = sbr.rel target = $region3
    $region8: #{tpu_custom_call.1} parent=1 // loop_exit
      _
    %2262 = vsyncpa [#allocation5], 1
    %s2263 = scalar_lea.sflag [#allocation5], 1
    %2264 = vsyncpa %s2263, 1
    %2265 = vsyncpa [#allocation6], 1
    %s2266 = scalar_lea.sflag [#allocation6], 1
    %2267 = vsyncpa %s2266, 1

</llo_original>
